<compile_context>
chip_gen: v7x
topology: tpu7x:2x2x1
jax: 0.10.0
libtpu: 0.0.40
codegen_flags: <defaults>
</compile_context>

<pallas_src>
import math

import jax
import jax.numpy as jnp
from jax.experimental import pallas as pl
from jax.experimental.pallas import tpu as pltpu

# ----- model dims (small, consistent with the forward) -----
B, S, D = 2, 8, 32        # batch, seq, d_model
H = 4                     # heads
DK = D // H               # head dim
DFF = 64                  # feed-forward hidden
NLAYERS = 2               # N encoder layers
EPS = 1e-6
BS = B * S                # folded row count

# MXU operand dtype (accumulation is always f32).  Set to jnp.float32 to disable.
# Elementwise (LayerNorm/softmax/residual/mask) math is always f32 — v5e-safe.
MXU_DTYPE = jnp.bfloat16


# ---------------------------------------------------------------------------
# in-kernel helpers
# ---------------------------------------------------------------------------
def _layernorm(x, a2, b2):
    # torch semantics: mean over last dim, UNBIASED std (ddof=1),
    # y = a_2 * (x - mean) / (std + eps) + b_2.  Exact reciprocal on this path.
    mean = jnp.mean(x, axis=-1, keepdims=True)
    xc = x - mean
    var = jnp.sum(xc * xc, axis=-1, keepdims=True) * (1.0 / (x.shape[-1] - 1))
    return a2 * xc * (1.0 / (jnp.sqrt(var) + EPS)) + b2


def _softmax(s):
    m = jnp.max(s, axis=-1, keepdims=True)
    e = jnp.exp(s - m)
    return e * pl.reciprocal(jnp.sum(e, axis=-1, keepdims=True), approx=True)  # EUP


# ---------------------------------------------------------------------------
# one encoder layer per grid step; activation carried in the output block
# ---------------------------------------------------------------------------
def encoder_layer_kernel(x_ref, bias_ref,
                         ln1a_ref, ln1b_ref, wqkv_ref, bqkv_ref, wo_ref, bo_ref,
                         ln2a_ref, ln2b_ref, w1_ref, b1_ref, w2_ref, b2_ref,
                         nfa_ref, nfb_ref,
                         o_ref):
    l = pl.program_id(0)

    @pl.when(l == 0)
    def _():
        o_ref[...] = x_ref[...]          # x read once; block stays VMEM-resident

    x = o_ref[...]                       # (BS, D) f32 carried activation

    # ---- sublayer 1: x + SelfAttn(LayerNorm(x))   (dropout = identity, eval) ----
    xn = _layernorm(x, ln1a_ref[...], ln1b_ref[...])
    # fused QKV projection; 1/sqrt(DK) already folded into the Q columns at pack time
    qkv = jnp.dot(xn.astype(MXU_DTYPE), wqkv_ref[...],
                  preferred_element_type=jnp.float32) + bqkv_ref[...]
    qkv_m = qkv.astype(MXU_DTYPE)

    # per-head scores stacked along sublanes -> ONE softmax chain for all heads
    s_parts = []
    for h in range(H):                   # static unroll, lane slices, no 4-D transposes
        q_h = qkv_m[:, h * DK:(h + 1) * DK]
        k_h = qkv_m[:, D + h * DK:D + (h + 1) * DK]
        s_parts.append(jax.lax.dot_general(q_h, k_h, (((1,), (1,)), ((), ())),
                                           preferred_element_type=jnp.float32))
    s_all = jnp.concatenate(s_parts, axis=0) + bias_ref[...]   # (H*BS, BS) + additive mask
    p_all = _softmax(s_all)                                    # one max/exp/sum/rcp

    # per-head context, lane-concatenated, then ONE K=D output projection matmul
    ctx_parts = []
    for h in range(H):
        p_h = p_all[h * BS:(h + 1) * BS, :].astype(MXU_DTYPE)
        v_h = qkv_m[:, 2 * D + h * DK:2 * D + (h + 1) * DK]
        ctx_parts.append(jnp.dot(p_h, v_h, preferred_element_type=jnp.float32))
    ctx = jnp.concatenate(ctx_parts, axis=1).astype(MXU_DTYPE)  # (BS, D)
    x = x + jnp.dot(ctx, wo_ref[...], preferred_element_type=jnp.float32) + bo_ref[...]

    # ---- sublayer 2: x + FFN(LayerNorm(x)),  FFN = W2 relu(W1 x + b1) + b2 ----
    xn = _layernorm(x, ln2a_ref[...], ln2b_ref[...])
    hmid = jnp.dot(xn.astype(MXU_DTYPE), w1_ref[...],
                   preferred_element_type=jnp.float32) + b1_ref[...]
    hmid = jnp.maximum(hmid, 0.0).astype(MXU_DTYPE)
    x = x + jnp.dot(hmid, w2_ref[...], preferred_element_type=jnp.float32) + b2_ref[...]

    o_ref[...] = x

    # final LayerNorm after the last layer
    @pl.when(l == pl.num_programs(0) - 1)
    def _():
        o_ref[...] = _layernorm(o_ref[...], nfa_ref[...], nfb_ref[...])


# ---------------------------------------------------------------------------
# wrapper
# ---------------------------------------------------------------------------
def _full(shape):
    # whole-array block, same block for every layer step (loaded/written once)
    return pl.BlockSpec(shape, lambda l, _n=len(shape): (0,) * _n)


def _per_layer(shape_wo_layer):
    # leading NLAYERS axis squeezed; one layer's slice streamed per grid step
    nd = len(shape_wo_layer)
    return pl.BlockSpec((None,) + tuple(shape_wo_layer),
                        lambda l, _n=nd: (l,) + (0,) * _n)


# advisory cost hint for XLA scheduling around the fused custom call
_FLOPS = NLAYERS * (2 * BS * D * 3 * D            # QKV projection
                    + 2 * 2 * H * BS * BS * DK    # QK^T + PV
                    + 2 * BS * D * D              # output projection
                    + 2 * 2 * BS * D * DFF)       # FFN
_TRANSC = NLAYERS * (H * BS * BS + H * BS + 4 * BS) + BS
_BYTES = (2 * BS * D * 4 + H * BS * BS * 4 + 2 * D * 4
          + NLAYERS * ((3 * D * D + D * D + 2 * D * DFF) * 2      # bf16 weights
                       + (3 * D + 2 * D + DFF + 4 * D) * 4))      # f32 biases / LN params


@jax.jit
def encoder_forward(x, packed):
    x2 = x.reshape(BS, D)    # fold (B,S,D) -> (B*S,D): plain 2-D matmuls in-kernel
    out2 = pl.pallas_call(
        encoder_layer_kernel,
        out_shape=jax.ShapeDtypeStruct((BS, D), jnp.float32),
        grid=(NLAYERS,),
        in_specs=[
            _full((BS, D)),            # x
            _full((H * BS, BS)),       # additive block-diag batch mask (precomputed)
            _per_layer((1, D)),        # ln1 gain
            _per_layer((1, D)),        # ln1 bias
            _per_layer((D, 3 * D)),    # wqkv (pre-transposed, Q pre-scaled, bf16)
            _per_layer((1, 3 * D)),    # bqkv (Q part pre-scaled, f32)
            _per_layer((D, D)),        # wo (pre-transposed, bf16)
            _per_layer((1, D)),        # bo
            _per_layer((1, D)),        # ln2 gain
            _per_layer((1, D)),        # ln2 bias
            _per_layer((D, DFF)),      # w1 (bf16)
            _per_layer((1, DFF)),      # b1
            _per_layer((DFF, D)),      # w2 (bf16)
            _per_layer((1, D)),        # b2
            _full((1, D)),             # final norm gain
            _full((1, D)),             # final norm bias
        ],
        out_specs=_full((BS, D)),      # same block every l -> VMEM-resident accumulator
        input_output_aliases={0: 0},   # result written over the x buffer
        compiler_params=pltpu.CompilerParams(dimension_semantics=("arbitrary",)),
        cost_estimate=pl.CostEstimate(flops=_FLOPS, transcendentals=_TRANSC,
                                      bytes_accessed=_BYTES),
    )(x2, packed["att_bias"],
      packed["ln1a"], packed["ln1b"], packed["wqkv"], packed["bqkv"],
      packed["wo"], packed["bo"],
      packed["ln2a"], packed["ln2b"], packed["w1"], packed["b1"],
      packed["w2"], packed["b2"],
      packed["nfa"], packed["nfb"])
    return out2.reshape(B, S, D)


# ---------------------------------------------------------------------------
# deterministic parameter init (torch layout: Linear weight is (out, in))
# ---------------------------------------------------------------------------
def init_params(key):
    def lin(k, out_dim, in_dim):
        kw, kb = jax.random.split(k)
        w = jax.random.normal(kw, (out_dim, in_dim), jnp.float32) * 0.05
        b = jax.random.normal(kb, (1, out_dim), jnp.float32) * 0.05
        return w, b

    layers = []
    for i in range(NLAYERS):
        k = jax.random.fold_in(key, i)
        ks = jax.random.split(k, 6)
        wq, bq = lin(ks[0], D, D)
        wk, bk = lin(ks[1], D, D)
        wv, bv = lin(ks[2], D, D)
        wo, bo = lin(ks[3], D, D)
        w1, b1 = lin(ks[4], DFF, D)
        w2, b2 = lin(ks[5], D, DFF)
        layers.append(dict(
            ln1_a=jnp.ones((1, D), jnp.float32), ln1_b=jnp.zeros((1, D), jnp.float32),
            ln2_a=jnp.ones((1, D), jnp.float32), ln2_b=jnp.zeros((1, D), jnp.float32),
            wq=wq, bq=bq, wk=wk, bk=bk, wv=wv, bv=bv, wo=wo, bo=bo,
            w1=w1, b1=b1, w2=w2, b2=b2,
        ))
    return dict(
        layers=layers,
        norm_a=jnp.ones((1, D), jnp.float32),
        norm_b=jnp.zeros((1, D), jnp.float32),
    )


def pack_params(params):
    """One-time, off the hot path: stack per-layer params on a leading NLAYERS axis,
    transpose Linear weights to (in, out), fuse Wq/Wk/Wv into one (D, 3D) matrix with
    1/sqrt(DK) folded into the Q columns/bias, cast MXU weights to bf16, and precompute
    the additive block-diagonal "same batch" attention bias."""
    L = params["layers"]
    scale = 1.0 / math.sqrt(DK)

    def stack(key):
        return jnp.stack([lp[key] for lp in L])

    wqkv = jnp.stack([
        jnp.concatenate([lp["wq"] * scale, lp["wk"], lp["wv"]], axis=0).T for lp in L
    ]).astype(MXU_DTYPE)                                                 # (N, D, 3D)
    bqkv = jnp.stack([
        jnp.concatenate([lp["bq"] * scale, lp["bk"], lp["bv"]], axis=1) for lp in L
    ])                                                                   # (N, 1, 3D) f32

    # rows i (stacked over heads) and cols j may attend iff same batch: additive bias
    r = (jnp.arange(H * BS) % BS) // S
    c = jnp.arange(BS) // S
    att_bias = jnp.where(r[:, None] == c[None, :], 0.0, -1e30).astype(jnp.float32)

    return dict(
        att_bias=att_bias,                                               # (H*BS, BS)
        ln1a=stack("ln1_a"), ln1b=stack("ln1_b"),
        wqkv=wqkv, bqkv=bqkv,
        wo=jnp.stack([lp["wo"].T for lp in L]).astype(MXU_DTYPE),        # (N, D, D)
        bo=stack("bo"),                                                  # (N, 1, D)
        ln2a=stack("ln2_a"), ln2b=stack("ln2_b"),
        w1=jnp.stack([lp["w1"].T for lp in L]).astype(MXU_DTYPE),        # (N, D, DFF)
        b1=stack("b1"),                                                  # (N, 1, DFF)
        w2=jnp.stack([lp["w2"].T for lp in L]).astype(MXU_DTYPE),        # (N, DFF, D)
        b2=stack("b2"),                                                  # (N, 1, D)
        nfa=params["norm_a"], nfb=params["norm_b"],                      # (1, D)
    )


# ---------------------------------------------------------------------------
# pure-JAX reference (torch-faithful, f32) for a sanity check of the Pallas path
# ---------------------------------------------------------------------------
def reference_forward(x, params):
    def ln(x, a, b):
        mean = jnp.mean(x, axis=-1, keepdims=True)
        var = jnp.sum((x - mean) ** 2, axis=-1, keepdims=True) / (x.shape[-1] - 1)
        return a * (x - mean) / (jnp.sqrt(var) + EPS) + b

    for lp in params["layers"]:
        xn = ln(x, lp["ln1_a"], lp["ln1_b"])
        q = xn @ lp["wq"].T + lp["bq"]
        k = xn @ lp["wk"].T + lp["bk"]
        v = xn @ lp["wv"].T + lp["bv"]
        q = q.reshape(B, S, H, DK).transpose(0, 2, 1, 3)
        k = k.reshape(B, S, H, DK).transpose(0, 2, 1, 3)
        v = v.reshape(B, S, H, DK).transpose(0, 2, 1, 3)
        s = jnp.einsum('bhqd,bhkd->bhqk', q, k) / math.sqrt(DK)
        p = jax.nn.softmax(s, axis=-1)
        ctx = jnp.einsum('bhqk,bhkd->bhqd', p, v).transpose(0, 2, 1, 3).reshape(B, S, D)
        x = x + ctx @ lp["wo"].T + lp["bo"]

        xn = ln(x, lp["ln2_a"], lp["ln2_b"])
        h = jnp.maximum(xn @ lp["w1"].T + lp["b1"], 0.0)
        x = x + h @ lp["w2"].T + lp["b2"]
    return ln(x, params["norm_a"], params["norm_b"])


if __name__ == "__main__":
    key = jax.random.PRNGKey(0)
    kx, kp = jax.random.split(key)
    x = jax.random.normal(kx, (B, S, D), jnp.float32)
    params = init_params(kp)
    packed = pack_params(params)

    # reference first (robust against any output/input buffer aliasing of x)
    ref = reference_forward(x, params)

    out = encoder_forward(x, packed)
    out = jax.block_until_ready(out)

    assert out.shape == (B, S, D)
    assert bool(jnp.all(jnp.isfinite(out)))
    # tolerance covers bf16 MXU operands (f32 accumulation) + approx softmax reciprocal
    assert jnp.allclose(out, ref, atol=3e-2, rtol=3e-2), "Pallas output mismatch vs reference"

    print("KERNEL_OK")
</pallas_src>

<mosaic_0001>
module attributes {stable_mosaic.version = 11 : i64} {
  func.func @encoder_layer_kernel(%arg0: i32, %arg1: memref<16x32xf32, #tpu.memory_space<vmem>>, %arg2: memref<64x16xf32, #tpu.memory_space<vmem>>, %arg3: memref<1x1x32xf32, #tpu.memory_space<vmem>>, %arg4: memref<1x1x32xf32, #tpu.memory_space<vmem>>, %arg5: memref<1x32x96xbf16, #tpu.memory_space<vmem>>, %arg6: memref<1x1x96xf32, #tpu.memory_space<vmem>>, %arg7: memref<1x32x32xbf16, #tpu.memory_space<vmem>>, %arg8: memref<1x1x32xf32, #tpu.memory_space<vmem>>, %arg9: memref<1x1x32xf32, #tpu.memory_space<vmem>>, %arg10: memref<1x1x32xf32, #tpu.memory_space<vmem>>, %arg11: memref<1x32x64xbf16, #tpu.memory_space<vmem>>, %arg12: memref<1x1x64xf32, #tpu.memory_space<vmem>>, %arg13: memref<1x64x32xbf16, #tpu.memory_space<vmem>>, %arg14: memref<1x1x32xf32, #tpu.memory_space<vmem>>, %arg15: memref<1x32xf32, #tpu.memory_space<vmem>>, %arg16: memref<1x32xf32, #tpu.memory_space<vmem>>, %arg17: memref<16x32xf32, #tpu.memory_space<vmem>>) attributes {dimension_semantics = [#tpu.dimension_semantics<arbitrary>], iteration_bounds = array<i64: 2>, scalar_prefetch = 0 : i64, scratch_operands = 0 : i64, tpu.core_type = #tpu.core_type<tc>, window_params = [{pipeline_mode = #tpu.pipeline_mode<synchronous>, transform_indices = @transform_0, window_bounds = array<i64: 16, 32>}, {pipeline_mode = #tpu.pipeline_mode<synchronous>, transform_indices = @transform_1, window_bounds = array<i64: 64, 16>}, {transform_indices = @transform_2, window_bounds = array<i64: 1, 1, 32>}, {transform_indices = @transform_3, window_bounds = array<i64: 1, 1, 32>}, {transform_indices = @transform_4, window_bounds = array<i64: 1, 32, 96>}, {transform_indices = @transform_5, window_bounds = array<i64: 1, 1, 96>}, {transform_indices = @transform_6, window_bounds = array<i64: 1, 32, 32>}, {transform_indices = @transform_7, window_bounds = array<i64: 1, 1, 32>}, {transform_indices = @transform_8, window_bounds = array<i64: 1, 1, 32>}, {transform_indices = @transform_9, window_bounds = array<i64: 1, 1, 32>}, {transform_indices = @transform_10, window_bounds = array<i64: 1, 32, 64>}, {transform_indices = @transform_11, window_bounds = array<i64: 1, 1, 64>}, {transform_indices = @transform_12, window_bounds = array<i64: 1, 64, 32>}, {transform_indices = @transform_13, window_bounds = array<i64: 1, 1, 32>}, {pipeline_mode = #tpu.pipeline_mode<synchronous>, transform_indices = @transform_14, window_bounds = array<i64: 1, 32>}, {pipeline_mode = #tpu.pipeline_mode<synchronous>, transform_indices = @transform_15, window_bounds = array<i64: 1, 32>}, {pipeline_mode = #tpu.pipeline_mode<synchronous>, transform_indices = @transform_16, window_bounds = array<i64: 16, 32>}]} {
    %c0_i32 = arith.constant 0 : i32
    %0 = arith.cmpi eq, %arg0, %c0_i32 : i32
    %1 = arith.extui %0 : i1 to i32
    %c0_i32_0 = arith.constant 0 : i32
    %2 = arith.cmpi ne, %1, %c0_i32_0 : i32
    scf.if %2 {
      %c0_69 = arith.constant 0 : index
      %c0_70 = arith.constant 0 : index
      %139 = vector.load %arg1[%c0_69, %c0_70] : memref<16x32xf32, #tpu.memory_space<vmem>>, vector<16x32xf32>
      %c0_71 = arith.constant 0 : index
      %c0_72 = arith.constant 0 : index
      %140 = vector.load %arg17[%c0_71, %c0_72] : memref<16x32xf32, #tpu.memory_space<vmem>>, vector<16x32xf32>
      tpu.vector_store %arg17[%c0_71, %c0_72], %139 {strides = array<i32>} : memref<16x32xf32, #tpu.memory_space<vmem>>, vector<16x32xf32>,
    } else {
    }
    %c0 = arith.constant 0 : index
    %c0_1 = arith.constant 0 : index
    %3 = vector.load %arg17[%c0, %c0_1] : memref<16x32xf32, #tpu.memory_space<vmem>>, vector<16x32xf32>
    %c0_2 = arith.constant 0 : index
    %c0_3 = arith.constant 0 : index
    %c0_4 = arith.constant 0 : index
    %4 = vector.load %arg3[%c0_2, %c0_3, %c0_4] : memref<1x1x32xf32, #tpu.memory_space<vmem>>, vector<1x1x32xf32>
    %5 = vector.shape_cast %4 : vector<1x1x32xf32> to vector<1x32xf32>
    %c0_5 = arith.constant 0 : index
    %c0_6 = arith.constant 0 : index
    %c0_7 = arith.constant 0 : index
    %6 = vector.load %arg4[%c0_5, %c0_6, %c0_7] : memref<1x1x32xf32, #tpu.memory_space<vmem>>, vector<1x1x32xf32>
    %7 = vector.shape_cast %6 : vector<1x1x32xf32> to vector<1x32xf32>
    %cst = arith.constant dense<0.000000e+00> : vector<16xf32>
    %8 = vector.multi_reduction <add>, %3, %cst [1] : vector<16x32xf32> to vector<16xf32>
    %9 = vector.shape_cast %8 : vector<16xf32> to vector<16x1xf32>
    %cst_8 = arith.constant 3.200000e+01 : f32
    %10 = vector.broadcast %cst_8 : f32 to vector<16x1xf32>
    %11 = arith.divf %9, %10 : vector<16x1xf32>
    %12 = vector.broadcast %11 : vector<16x1xf32> to vector<16x32xf32>
    %13 = arith.subf %3, %12 : vector<16x32xf32>
    %14 = arith.mulf %13, %13 : vector<16x32xf32>
    %cst_9 = arith.constant dense<0.000000e+00> : vector<16xf32>
    %15 = vector.multi_reduction <add>, %14, %cst_9 [1] : vector<16x32xf32> to vector<16xf32>
    %16 = vector.shape_cast %15 : vector<16xf32> to vector<16x1xf32>
    %cst_10 = arith.constant 0.0322580636 : f32
    %17 = vector.broadcast %cst_10 : f32 to vector<16x1xf32>
    %18 = arith.mulf %16, %17 : vector<16x1xf32>
    %19 = vector.broadcast %5 : vector<1x32xf32> to vector<16x32xf32>
    %20 = arith.mulf %19, %13 : vector<16x32xf32>
    %21 = math.sqrt %18 : vector<16x1xf32>
    %cst_11 = arith.constant 9.99999997E-7 : f32
    %22 = vector.broadcast %cst_11 : f32 to vector<16x1xf32>
    %23 = arith.addf %21, %22 : vector<16x1xf32>
    %cst_12 = arith.constant 1.000000e+00 : f32
    %24 = vector.broadcast %cst_12 : f32 to vector<16x1xf32>
    %25 = arith.divf %24, %23 : vector<16x1xf32>
    %26 = vector.broadcast %25 : vector<16x1xf32> to vector<16x32xf32>
    %27 = arith.mulf %20, %26 : vector<16x32xf32>
    %28 = vector.broadcast %7 : vector<1x32xf32> to vector<16x32xf32>
    %29 = arith.addf %27, %28 : vector<16x32xf32>
    %30 = arith.truncf %29 : vector<16x32xf32> to vector<16x32xbf16>
    %c0_13 = arith.constant 0 : index
    %c0_14 = arith.constant 0 : index
    %c0_15 = arith.constant 0 : index
    %31 = vector.load %arg5[%c0_13, %c0_14, %c0_15] : memref<1x32x96xbf16, #tpu.memory_space<vmem>>, vector<1x32x96xbf16>
    %32 = vector.shape_cast %31 : vector<1x32x96xbf16> to vector<32x96xbf16>
    %cst_16 = arith.constant dense<0.000000e+00> : vector<16x96xf32>
    %33 = tpu.matmul %30, %32, %cst_16 {dimension_numbers = #tpu.dot_dimension_numbers<[1], [0], [0], [1], [0, 0, 1, 1], [], []>} : vector<16x32xbf16>, vector<32x96xbf16>, vector<16x96xf32> -> vector<16x96xf32>
    %c0_17 = arith.constant 0 : index
    %c0_18 = arith.constant 0 : index
    %c0_19 = arith.constant 0 : index
    %34 = vector.load %arg6[%c0_17, %c0_18, %c0_19] : memref<1x1x96xf32, #tpu.memory_space<vmem>>, vector<1x1x96xf32>
    %35 = vector.shape_cast %34 : vector<1x1x96xf32> to vector<1x96xf32>
    %36 = vector.broadcast %35 : vector<1x96xf32> to vector<16x96xf32>
    %37 = arith.addf %33, %36 : vector<16x96xf32>
    %38 = arith.truncf %37 : vector<16x96xf32> to vector<16x96xbf16>
    %39 = vector.extract_strided_slice %38 {offsets = [0, 0], sizes = [16, 8], strides = [1, 1]} : vector<16x96xbf16> to vector<16x8xbf16>
    %40 = vector.extract_strided_slice %38 {offsets = [0, 32], sizes = [16, 8], strides = [1, 1]} : vector<16x96xbf16> to vector<16x8xbf16>
    %cst_20 = arith.constant dense<0.000000e+00> : vector<16x16xf32>
    %41 = tpu.matmul %39, %40, %cst_20 {dimension_numbers = #tpu.dot_dimension_numbers<[1], [1], [0], [0], [0, 0, 1, 0], [], []>} : vector<16x8xbf16>, vector<16x8xbf16>, vector<16x16xf32> -> vector<16x16xf32>
    %42 = vector.extract_strided_slice %38 {offsets = [0, 8], sizes = [16, 8], strides = [1, 1]} : vector<16x96xbf16> to vector<16x8xbf16>
    %43 = vector.extract_strided_slice %38 {offsets = [0, 40], sizes = [16, 8], strides = [1, 1]} : vector<16x96xbf16> to vector<16x8xbf16>
    %cst_21 = arith.constant dense<0.000000e+00> : vector<16x16xf32>
    %44 = tpu.matmul %42, %43, %cst_21 {dimension_numbers = #tpu.dot_dimension_numbers<[1], [1], [0], [0], [0, 0, 1, 0], [], []>} : vector<16x8xbf16>, vector<16x8xbf16>, vector<16x16xf32> -> vector<16x16xf32>
    %45 = vector.extract_strided_slice %38 {offsets = [0, 16], sizes = [16, 8], strides = [1, 1]} : vector<16x96xbf16> to vector<16x8xbf16>
    %46 = vector.extract_strided_slice %38 {offsets = [0, 48], sizes = [16, 8], strides = [1, 1]} : vector<16x96xbf16> to vector<16x8xbf16>
    %cst_22 = arith.constant dense<0.000000e+00> : vector<16x16xf32>
    %47 = tpu.matmul %45, %46, %cst_22 {dimension_numbers = #tpu.dot_dimension_numbers<[1], [1], [0], [0], [0, 0, 1, 0], [], []>} : vector<16x8xbf16>, vector<16x8xbf16>, vector<16x16xf32> -> vector<16x16xf32>
    %48 = vector.extract_strided_slice %38 {offsets = [0, 24], sizes = [16, 8], strides = [1, 1]} : vector<16x96xbf16> to vector<16x8xbf16>
    %49 = vector.extract_strided_slice %38 {offsets = [0, 56], sizes = [16, 8], strides = [1, 1]} : vector<16x96xbf16> to vector<16x8xbf16>
    %cst_23 = arith.constant dense<0.000000e+00> : vector<16x16xf32>
    %50 = tpu.matmul %48, %49, %cst_23 {dimension_numbers = #tpu.dot_dimension_numbers<[1], [1], [0], [0], [0, 0, 1, 0], [], []>} : vector<16x8xbf16>, vector<16x8xbf16>, vector<16x16xf32> -> vector<16x16xf32>
    %51 = tpu.concatenate %41, %44, %47, %50 in 0 : vector<16x16xf32>, vector<16x16xf32>, vector<16x16xf32>, vector<16x16xf32> -> vector<64x16xf32>
    %c0_24 = arith.constant 0 : index
    %c0_25 = arith.constant 0 : index
    %52 = vector.load %arg2[%c0_24, %c0_25] : memref<64x16xf32, #tpu.memory_space<vmem>>, vector<64x16xf32>
    %53 = arith.addf %51, %52 : vector<64x16xf32>
    %cst_26 = arith.constant dense<0xFF800000> : vector<64xf32>
    %54 = vector.multi_reduction <maximumf>, %53, %cst_26 [1] : vector<64x16xf32> to vector<64xf32>
    %55 = vector.shape_cast %54 : vector<64xf32> to vector<64x1xf32>
    %56 = vector.broadcast %55 : vector<64x1xf32> to vector<64x16xf32>
    %57 = arith.subf %53, %56 : vector<64x16xf32>
    %58 = math.exp %57 : vector<64x16xf32>
    %cst_27 = arith.constant dense<0.000000e+00> : vector<64xf32>
    %59 = vector.multi_reduction <add>, %58, %cst_27 [1] : vector<64x16xf32> to vector<64xf32>
    %60 = vector.shape_cast %59 : vector<64xf32> to vector<64x1xf32>
    %61 = tpu.reciprocal %60 {approx = true} : vector<64x1xf32> -> vector<64x1xf32>
    %62 = vector.broadcast %61 : vector<64x1xf32> to vector<64x16xf32>
    %63 = arith.mulf %58, %62 : vector<64x16xf32>
    %64 = vector.extract_strided_slice %63 {offsets = [0, 0], sizes = [16, 16], strides = [1, 1]} : vector<64x16xf32> to vector<16x16xf32>
    %65 = arith.truncf %64 : vector<16x16xf32> to vector<16x16xbf16>
    %66 = vector.extract_strided_slice %38 {offsets = [0, 64], sizes = [16, 8], strides = [1, 1]} : vector<16x96xbf16> to vector<16x8xbf16>
    %cst_28 = arith.constant dense<0.000000e+00> : vector<16x8xf32>
    %67 = tpu.matmul %65, %66, %cst_28 {dimension_numbers = #tpu.dot_dimension_numbers<[1], [0], [0], [1], [0, 0, 1, 1], [], []>} : vector<16x16xbf16>, vector<16x8xbf16>, vector<16x8xf32> -> vector<16x8xf32>
    %68 = vector.extract_strided_slice %63 {offsets = [16, 0], sizes = [16, 16], strides = [1, 1]} : vector<64x16xf32> to vector<16x16xf32>
    %69 = arith.truncf %68 : vector<16x16xf32> to vector<16x16xbf16>
    %70 = vector.extract_strided_slice %38 {offsets = [0, 72], sizes = [16, 8], strides = [1, 1]} : vector<16x96xbf16> to vector<16x8xbf16>
    %cst_29 = arith.constant dense<0.000000e+00> : vector<16x8xf32>
    %71 = tpu.matmul %69, %70, %cst_29 {dimension_numbers = #tpu.dot_dimension_numbers<[1], [0], [0], [1], [0, 0, 1, 1], [], []>} : vector<16x16xbf16>, vector<16x8xbf16>, vector<16x8xf32> -> vector<16x8xf32>
    %72 = vector.extract_strided_slice %63 {offsets = [32, 0], sizes = [16, 16], strides = [1, 1]} : vector<64x16xf32> to vector<16x16xf32>
    %73 = arith.truncf %72 : vector<16x16xf32> to vector<16x16xbf16>
    %74 = vector.extract_strided_slice %38 {offsets = [0, 80], sizes = [16, 8], strides = [1, 1]} : vector<16x96xbf16> to vector<16x8xbf16>
    %cst_30 = arith.constant dense<0.000000e+00> : vector<16x8xf32>
    %75 = tpu.matmul %73, %74, %cst_30 {dimension_numbers = #tpu.dot_dimension_numbers<[1], [0], [0], [1], [0, 0, 1, 1], [], []>} : vector<16x16xbf16>, vector<16x8xbf16>, vector<16x8xf32> -> vector<16x8xf32>
    %76 = vector.extract_strided_slice %63 {offsets = [48, 0], sizes = [16, 16], strides = [1, 1]} : vector<64x16xf32> to vector<16x16xf32>
    %77 = arith.truncf %76 : vector<16x16xf32> to vector<16x16xbf16>
    %78 = vector.extract_strided_slice %38 {offsets = [0, 88], sizes = [16, 8], strides = [1, 1]} : vector<16x96xbf16> to vector<16x8xbf16>
    %cst_31 = arith.constant dense<0.000000e+00> : vector<16x8xf32>
    %79 = tpu.matmul %77, %78, %cst_31 {dimension_numbers = #tpu.dot_dimension_numbers<[1], [0], [0], [1], [0, 0, 1, 1], [], []>} : vector<16x16xbf16>, vector<16x8xbf16>, vector<16x8xf32> -> vector<16x8xf32>
    %80 = tpu.concatenate %67, %71, %75, %79 in 1 : vector<16x8xf32>, vector<16x8xf32>, vector<16x8xf32>, vector<16x8xf32> -> vector<16x32xf32>
    %81 = arith.truncf %80 : vector<16x32xf32> to vector<16x32xbf16>
    %c0_32 = arith.constant 0 : index
    %c0_33 = arith.constant 0 : index
    %c0_34 = arith.constant 0 : index
    %82 = vector.load %arg7[%c0_32, %c0_33, %c0_34] : memref<1x32x32xbf16, #tpu.memory_space<vmem>>, vector<1x32x32xbf16>
    %83 = vector.shape_cast %82 : vector<1x32x32xbf16> to vector<32x32xbf16>
    %cst_35 = arith.constant dense<0.000000e+00> : vector<16x32xf32>
    %84 = tpu.matmul %81, %83, %cst_35 {dimension_numbers = #tpu.dot_dimension_numbers<[1], [0], [0], [1], [0, 0, 1, 1], [], []>} : vector<16x32xbf16>, vector<32x32xbf16>, vector<16x32xf32> -> vector<16x32xf32>
    %85 = arith.addf %3, %84 : vector<16x32xf32>
    %c0_36 = arith.constant 0 : index
    %c0_37 = arith.constant 0 : index
    %c0_38 = arith.constant 0 : index
    %86 = vector.load %arg8[%c0_36, %c0_37, %c0_38] : memref<1x1x32xf32, #tpu.memory_space<vmem>>, vector<1x1x32xf32>
    %87 = vector.shape_cast %86 : vector<1x1x32xf32> to vector<1x32xf32>
    %88 = vector.broadcast %87 : vector<1x32xf32> to vector<16x32xf32>
    %89 = arith.addf %85, %88 : vector<16x32xf32>
    %c0_39 = arith.constant 0 : index
    %c0_40 = arith.constant 0 : index
    %c0_41 = arith.constant 0 : index
    %90 = vector.load %arg9[%c0_39, %c0_40, %c0_41] : memref<1x1x32xf32, #tpu.memory_space<vmem>>, vector<1x1x32xf32>
    %91 = vector.shape_cast %90 : vector<1x1x32xf32> to vector<1x32xf32>
    %c0_42 = arith.constant 0 : index
    %c0_43 = arith.constant 0 : index
    %c0_44 = arith.constant 0 : index
    %92 = vector.load %arg10[%c0_42, %c0_43, %c0_44] : memref<1x1x32xf32, #tpu.memory_space<vmem>>, vector<1x1x32xf32>
    %93 = vector.shape_cast %92 : vector<1x1x32xf32> to vector<1x32xf32>
    %cst_45 = arith.constant dense<0.000000e+00> : vector<16xf32>
    %94 = vector.multi_reduction <add>, %89, %cst_45 [1] : vector<16x32xf32> to vector<16xf32>
    %95 = vector.shape_cast %94 : vector<16xf32> to vector<16x1xf32>
    %cst_46 = arith.constant 3.200000e+01 : f32
    %96 = vector.broadcast %cst_46 : f32 to vector<16x1xf32>
    %97 = arith.divf %95, %96 : vector<16x1xf32>
    %98 = vector.broadcast %97 : vector<16x1xf32> to vector<16x32xf32>
    %99 = arith.subf %89, %98 : vector<16x32xf32>
    %100 = arith.mulf %99, %99 : vector<16x32xf32>
    %cst_47 = arith.constant dense<0.000000e+00> : vector<16xf32>
    %101 = vector.multi_reduction <add>, %100, %cst_47 [1] : vector<16x32xf32> to vector<16xf32>
    %102 = vector.shape_cast %101 : vector<16xf32> to vector<16x1xf32>
    %cst_48 = arith.constant 0.0322580636 : f32
    %103 = vector.broadcast %cst_48 : f32 to vector<16x1xf32>
    %104 = arith.mulf %102, %103 : vector<16x1xf32>
    %105 = vector.broadcast %91 : vector<1x32xf32> to vector<16x32xf32>
    %106 = arith.mulf %105, %99 : vector<16x32xf32>
    %107 = math.sqrt %104 : vector<16x1xf32>
    %cst_49 = arith.constant 9.99999997E-7 : f32
    %108 = vector.broadcast %cst_49 : f32 to vector<16x1xf32>
    %109 = arith.addf %107, %108 : vector<16x1xf32>
    %cst_50 = arith.constant 1.000000e+00 : f32
    %110 = vector.broadcast %cst_50 : f32 to vector<16x1xf32>
    %111 = arith.divf %110, %109 : vector<16x1xf32>
    %112 = vector.broadcast %111 : vector<16x1xf32> to vector<16x32xf32>
    %113 = arith.mulf %106, %112 : vector<16x32xf32>
    %114 = vector.broadcast %93 : vector<1x32xf32> to vector<16x32xf32>
    %115 = arith.addf %113, %114 : vector<16x32xf32>
    %116 = arith.truncf %115 : vector<16x32xf32> to vector<16x32xbf16>
    %c0_51 = arith.constant 0 : index
    %c0_52 = arith.constant 0 : index
    %c0_53 = arith.constant 0 : index
    %117 = vector.load %arg11[%c0_51, %c0_52, %c0_53] : memref<1x32x64xbf16, #tpu.memory_space<vmem>>, vector<1x32x64xbf16>
    %118 = vector.shape_cast %117 : vector<1x32x64xbf16> to vector<32x64xbf16>
    %cst_54 = arith.constant dense<0.000000e+00> : vector<16x64xf32>
    %119 = tpu.matmul %116, %118, %cst_54 {dimension_numbers = #tpu.dot_dimension_numbers<[1], [0], [0], [1], [0, 0, 1, 1], [], []>} : vector<16x32xbf16>, vector<32x64xbf16>, vector<16x64xf32> -> vector<16x64xf32>
    %c0_55 = arith.constant 0 : index
    %c0_56 = arith.constant 0 : index
    %c0_57 = arith.constant 0 : index
    %120 = vector.load %arg12[%c0_55, %c0_56, %c0_57] : memref<1x1x64xf32, #tpu.memory_space<vmem>>, vector<1x1x64xf32>
    %121 = vector.shape_cast %120 : vector<1x1x64xf32> to vector<1x64xf32>
    %122 = vector.broadcast %121 : vector<1x64xf32> to vector<16x64xf32>
    %123 = arith.addf %119, %122 : vector<16x64xf32>
    %cst_58 = arith.constant 0.000000e+00 : f32
    %124 = vector.broadcast %cst_58 : f32 to vector<16x64xf32>
    %125 = arith.maximumf %123, %124 : vector<16x64xf32>
    %126 = arith.truncf %125 : vector<16x64xf32> to vector<16x64xbf16>
    %c0_59 = arith.constant 0 : index
    %c0_60 = arith.constant 0 : index
    %c0_61 = arith.constant 0 : index
    %127 = vector.load %arg13[%c0_59, %c0_60, %c0_61] : memref<1x64x32xbf16, #tpu.memory_space<vmem>>, vector<1x64x32xbf16>
    %128 = vector.shape_cast %127 : vector<1x64x32xbf16> to vector<64x32xbf16>
    %cst_62 = arith.constant dense<0.000000e+00> : vector<16x32xf32>
    %129 = tpu.matmul %126, %128, %cst_62 {dimension_numbers = #tpu.dot_dimension_numbers<[1], [0], [0], [1], [0, 0, 1, 1], [], []>} : vector<16x64xbf16>, vector<64x32xbf16>, vector<16x32xf32> -> vector<16x32xf32>
    %130 = arith.addf %89, %129 : vector<16x32xf32>
    %c0_63 = arith.constant 0 : index
    %c0_64 = arith.constant 0 : index
    %c0_65 = arith.constant 0 : index
    %131 = vector.load %arg14[%c0_63, %c0_64, %c0_65] : memref<1x1x32xf32, #tpu.memory_space<vmem>>, vector<1x1x32xf32>
    %132 = vector.shape_cast %131 : vector<1x1x32xf32> to vector<1x32xf32>
    %133 = vector.broadcast %132 : vector<1x32xf32> to vector<16x32xf32>
    %134 = arith.addf %130, %133 : vector<16x32xf32>
    %c0_66 = arith.constant 0 : index
    %c0_67 = arith.constant 0 : index
    %135 = vector.load %arg17[%c0_66, %c0_67] : memref<16x32xf32, #tpu.memory_space<vmem>>, vector<16x32xf32>
    tpu.vector_store %arg17[%c0_66, %c0_67], %134 {strides = array<i32>} : memref<16x32xf32, #tpu.memory_space<vmem>>, vector<16x32xf32>,
    %c1_i32 = arith.constant 1 : i32
    %136 = arith.cmpi eq, %arg0, %c1_i32 : i32
    %137 = arith.extui %136 : i1 to i32
    %c0_i32_68 = arith.constant 0 : i32
    %138 = arith.cmpi ne, %137, %c0_i32_68 : i32
    scf.if %138 {
      %c0_69 = arith.constant 0 : index
      %c0_70 = arith.constant 0 : index
      %139 = vector.load %arg17[%c0_69, %c0_70] : memref<16x32xf32, #tpu.memory_space<vmem>>, vector<16x32xf32>
      %c0_71 = arith.constant 0 : index
      %c0_72 = arith.constant 0 : index
      %140 = vector.load %arg15[%c0_71, %c0_72] : memref<1x32xf32, #tpu.memory_space<vmem>>, vector<1x32xf32>
      %c0_73 = arith.constant 0 : index
      %c0_74 = arith.constant 0 : index
      %141 = vector.load %arg16[%c0_73, %c0_74] : memref<1x32xf32, #tpu.memory_space<vmem>>, vector<1x32xf32>
      %cst_75 = arith.constant dense<0.000000e+00> : vector<16xf32>
      %142 = vector.multi_reduction <add>, %139, %cst_75 [1] : vector<16x32xf32> to vector<16xf32>
      %143 = vector.shape_cast %142 : vector<16xf32> to vector<16x1xf32>
      %cst_76 = arith.constant 3.200000e+01 : f32
      %144 = vector.broadcast %cst_76 : f32 to vector<16x1xf32>
      %145 = arith.divf %143, %144 : vector<16x1xf32>
      %146 = vector.broadcast %145 : vector<16x1xf32> to vector<16x32xf32>
      %147 = arith.subf %139, %146 : vector<16x32xf32>
      %148 = arith.mulf %147, %147 : vector<16x32xf32>
      %cst_77 = arith.constant dense<0.000000e+00> : vector<16xf32>
      %149 = vector.multi_reduction <add>, %148, %cst_77 [1] : vector<16x32xf32> to vector<16xf32>
      %150 = vector.shape_cast %149 : vector<16xf32> to vector<16x1xf32>
      %cst_78 = arith.constant 0.0322580636 : f32
      %151 = vector.broadcast %cst_78 : f32 to vector<16x1xf32>
      %152 = arith.mulf %150, %151 : vector<16x1xf32>
      %153 = vector.broadcast %140 : vector<1x32xf32> to vector<16x32xf32>
      %154 = arith.mulf %153, %147 : vector<16x32xf32>
      %155 = math.sqrt %152 : vector<16x1xf32>
      %cst_79 = arith.constant 9.99999997E-7 : f32
      %156 = vector.broadcast %cst_79 : f32 to vector<16x1xf32>
      %157 = arith.addf %155, %156 : vector<16x1xf32>
      %cst_80 = arith.constant 1.000000e+00 : f32
      %158 = vector.broadcast %cst_80 : f32 to vector<16x1xf32>
      %159 = arith.divf %158, %157 : vector<16x1xf32>
      %160 = vector.broadcast %159 : vector<16x1xf32> to vector<16x32xf32>
      %161 = arith.mulf %154, %160 : vector<16x32xf32>
      %162 = vector.broadcast %141 : vector<1x32xf32> to vector<16x32xf32>
      %163 = arith.addf %161, %162 : vector<16x32xf32>
      %c0_81 = arith.constant 0 : index
      %c0_82 = arith.constant 0 : index
      %164 = vector.load %arg17[%c0_81, %c0_82] : memref<16x32xf32, #tpu.memory_space<vmem>>, vector<16x32xf32>
      tpu.vector_store %arg17[%c0_81, %c0_82], %163 {strides = array<i32>} : memref<16x32xf32, #tpu.memory_space<vmem>>, vector<16x32xf32>,
    } else {
    }
    return
  }
  func.func @transform_0(%arg0: i32) -> (i32, i32) {
    %c0_i32 = arith.constant 0 : i32
    %c0_i32_0 = arith.constant 0 : i32
    %c0_i32_1 = arith.constant 0 : i32
    return %c0_i32, %c0_i32_0 : i32, i32
  }
  func.func @transform_1(%arg0: i32) -> (i32, i32) {
    %c0_i32 = arith.constant 0 : i32
    %c0_i32_0 = arith.constant 0 : i32
    %c0_i32_1 = arith.constant 0 : i32
    return %c0_i32, %c0_i32_0 : i32, i32
  }
  func.func @transform_2(%arg0: i32) -> (i32, i32, i32) {
    %c0_i32 = arith.constant 0 : i32
    %c0_i32_0 = arith.constant 0 : i32
    %c0_i32_1 = arith.constant 0 : i32
    return %arg0, %c0_i32, %c0_i32_0 : i32, i32, i32
  }
  func.func @transform_3(%arg0: i32) -> (i32, i32, i32) {
    %c0_i32 = arith.constant 0 : i32
    %c0_i32_0 = arith.constant 0 : i32
    %c0_i32_1 = arith.constant 0 : i32
    return %arg0, %c0_i32, %c0_i32_0 : i32, i32, i32
  }
  func.func @transform_4(%arg0: i32) -> (i32, i32, i32) {
    %c0_i32 = arith.constant 0 : i32
    %c0_i32_0 = arith.constant 0 : i32
    %c0_i32_1 = arith.constant 0 : i32
    return %arg0, %c0_i32, %c0_i32_0 : i32, i32, i32
  }
  func.func @transform_5(%arg0: i32) -> (i32, i32, i32) {
    %c0_i32 = arith.constant 0 : i32
    %c0_i32_0 = arith.constant 0 : i32
    %c0_i32_1 = arith.constant 0 : i32
    return %arg0, %c0_i32, %c0_i32_0 : i32, i32, i32
  }
  func.func @transform_6(%arg0: i32) -> (i32, i32, i32) {
    %c0_i32 = arith.constant 0 : i32
    %c0_i32_0 = arith.constant 0 : i32
    %c0_i32_1 = arith.constant 0 : i32
    return %arg0, %c0_i32, %c0_i32_0 : i32, i32, i32
  }
  func.func @transform_7(%arg0: i32) -> (i32, i32, i32) {
    %c0_i32 = arith.constant 0 : i32
    %c0_i32_0 = arith.constant 0 : i32
    %c0_i32_1 = arith.constant 0 : i32
    return %arg0, %c0_i32, %c0_i32_0 : i32, i32, i32
  }
  func.func @transform_8(%arg0: i32) -> (i32, i32, i32) {
    %c0_i32 = arith.constant 0 : i32
    %c0_i32_0 = arith.constant 0 : i32
    %c0_i32_1 = arith.constant 0 : i32
    return %arg0, %c0_i32, %c0_i32_0 : i32, i32, i32
  }
  func.func @transform_9(%arg0: i32) -> (i32, i32, i32) {
    %c0_i32 = arith.constant 0 : i32
    %c0_i32_0 = arith.constant 0 : i32
    %c0_i32_1 = arith.constant 0 : i32
    return %arg0, %c0_i32, %c0_i32_0 : i32, i32, i32
  }
  func.func @transform_10(%arg0: i32) -> (i32, i32, i32) {
    %c0_i32 = arith.constant 0 : i32
    %c0_i32_0 = arith.constant 0 : i32
    %c0_i32_1 = arith.constant 0 : i32
    return %arg0, %c0_i32, %c0_i32_0 : i32, i32, i32
  }
  func.func @transform_11(%arg0: i32) -> (i32, i32, i32) {
    %c0_i32 = arith.constant 0 : i32
    %c0_i32_0 = arith.constant 0 : i32
    %c0_i32_1 = arith.constant 0 : i32
    return %arg0, %c0_i32, %c0_i32_0 : i32, i32, i32
  }
  func.func @transform_12(%arg0: i32) -> (i32, i32, i32) {
    %c0_i32 = arith.constant 0 : i32
    %c0_i32_0 = arith.constant 0 : i32
    %c0_i32_1 = arith.constant 0 : i32
    return %arg0, %c0_i32, %c0_i32_0 : i32, i32, i32
  }
  func.func @transform_13(%arg0: i32) -> (i32, i32, i32) {
    %c0_i32 = arith.constant 0 : i32
    %c0_i32_0 = arith.constant 0 : i32
    %c0_i32_1 = arith.constant 0 : i32
    return %arg0, %c0_i32, %c0_i32_0 : i32, i32, i32
  }
  func.func @transform_14(%arg0: i32) -> (i32, i32) {
    %c0_i32 = arith.constant 0 : i32
    %c0_i32_0 = arith.constant 0 : i32
    %c0_i32_1 = arith.constant 0 : i32
    return %c0_i32, %c0_i32_0 : i32, i32
  }
  func.func @transform_15(%arg0: i32) -> (i32, i32) {
    %c0_i32 = arith.constant 0 : i32
    %c0_i32_0 = arith.constant 0 : i32
    %c0_i32_1 = arith.constant 0 : i32
    return %c0_i32, %c0_i32_0 : i32, i32
  }
  func.func @transform_16(%arg0: i32) -> (i32, i32) {
    %c0_i32 = arith.constant 0 : i32
    %c0_i32_0 = arith.constant 0 : i32
    %c0_i32_1 = arith.constant 0 : i32
    return %c0_i32, %c0_i32_0 : i32, i32
  }
}

</mosaic_0001>

<llo_original>
// kernel: encoder_forward.1
$region0: #{encoder_forward.1}
  #allocation0 [shape = 'u32[]', space=smem, size = 0x4, offset = 0x4, fixed_abs, tag = 'smem constant byte address 0x4 - core index']
  #allocation1 [shape = 'u32[144,128]{1,0:T(1,128)}', space=vmem, size = 0x12000, scoped, tag = 'internal scratch']
  %s0 = inlined_call_operand.vmem [shape: f32[16,32], index: 0, kind: input, shape index: {}, may-alias: {0,16}]
  %s1 = inlined_call_operand.vmem [shape: f32[64,16], index: 1, kind: input, shape index: {}]
  %s2 = inlined_call_operand.vmem [shape: f32[2,1,32], index: 2, kind: input, shape index: {}]
  %s3 = inlined_call_operand.vmem [shape: f32[2,1,32], index: 3, kind: input, shape index: {}]
  %s4 = inlined_call_operand.vmem [shape: bf16[2,32,96], index: 4, kind: input, shape index: {}]
  %s5 = inlined_call_operand.vmem [shape: f32[2,1,96], index: 5, kind: input, shape index: {}]
  %s6 = inlined_call_operand.vmem [shape: bf16[2,32,32], index: 6, kind: input, shape index: {}]
  %s7 = inlined_call_operand.vmem [shape: f32[2,1,32], index: 7, kind: input, shape index: {}]
  %s8 = inlined_call_operand.vmem [shape: f32[2,1,32], index: 8, kind: input, shape index: {}]
  %s9 = inlined_call_operand.vmem [shape: f32[2,1,32], index: 9, kind: input, shape index: {}]
  %s10 = inlined_call_operand.vmem [shape: bf16[2,32,64], index: 10, kind: input, shape index: {}]
  %s11 = inlined_call_operand.vmem [shape: f32[2,1,64], index: 11, kind: input, shape index: {}]
  %s12 = inlined_call_operand.vmem [shape: bf16[2,64,32], index: 12, kind: input, shape index: {}]
  %s13 = inlined_call_operand.vmem [shape: f32[2,1,32], index: 13, kind: input, shape index: {}]
  %s14 = inlined_call_operand.vmem [shape: f32[1,32], index: 14, kind: input, shape index: {}]
  %s15 = inlined_call_operand.vmem [shape: f32[1,32], index: 15, kind: input, shape index: {}]
  %s16 = inlined_call_operand.vmem [shape: f32[16,32], index: 16, kind: output, shape index: {}, may-alias: {0,16}]
  %s17 = sld [smem:[#allocation0]]
  $region105: #{encoder_forward.1} parent=0
    _
  %s19 = ssub.s32 1, %s17
  %s20 = scalar_select 0, %s19, %s17
  loop: start=0, step=1, limit=4
  $region2: #{encoder_forward.1} parent=0 // loop_pre_header
    _
  $region3: #{encoder_forward.1} parent=0 // loop_header
    %s22 = sphi 0, %s26
    %p23 = scmp.ge.s32.totalorder %s22, 4
    %s30 = sphi 0, %s30
    %s32 = sphi 0, %s30
    %s33 = sphi 0, %s32
    %s47 = sphi 0, %s33
    %s51 = sphi 0, %s51
    %s53 = sphi 0, %s51
    %s54 = sphi 0, %s53
    %s68 = sphi 0, %s54
    %s74 = sphi 0, %s76
    %s77 = sphi 0, %s74
    %s78 = sphi 0, %s77
    %s94 = sphi 0, %s78
    %s100 = sphi 0, %s102
    %s103 = sphi 0, %s100
    %s104 = sphi 0, %s103
    %s120 = sphi 0, %s104
    %s126 = sphi 0, %s128
    %s129 = sphi 0, %s126
    %s130 = sphi 0, %s129
    %s146 = sphi 0, %s130
    %s152 = sphi 0, %s154
    %s155 = sphi 0, %s152
    %s156 = sphi 0, %s155
    %s172 = sphi 0, %s156
    %s178 = sphi 0, %s180
    %s181 = sphi 0, %s178
    %s182 = sphi 0, %s181
    %s198 = sphi 0, %s182
    %s204 = sphi 0, %s206
    %s207 = sphi 0, %s204
    %s208 = sphi 0, %s207
    %s224 = sphi 0, %s208
    %s230 = sphi 0, %s232
    %s233 = sphi 0, %s230
    %s234 = sphi 0, %s233
    %s250 = sphi 0, %s234
    %s256 = sphi 0, %s258
    %s259 = sphi 0, %s256
    %s260 = sphi 0, %s259
    %s276 = sphi 0, %s260
    %s282 = sphi 0, %s284
    %s285 = sphi 0, %s282
    %s286 = sphi 0, %s285
    %s302 = sphi 0, %s286
    %s308 = sphi 0, %s310
    %s311 = sphi 0, %s308
    %s312 = sphi 0, %s311
    %s328 = sphi 0, %s312
    %s334 = sphi 0, %s336
    %s337 = sphi 0, %s334
    %s338 = sphi 0, %s337
    %s354 = sphi 0, %s338
    %s360 = sphi 0, %s362
    %s363 = sphi 0, %s360
    %s364 = sphi 0, %s363
    %s380 = sphi 0, %s364
    %s384 = sphi 0, %s384
    %s386 = sphi 0, %s384
    %s387 = sphi 0, %s386
    %s401 = sphi 0, %s387
    %s405 = sphi 0, %s405
    %s407 = sphi 0, %s405
    %s408 = sphi 0, %s407
    %s422 = sphi 0, %s408
    %s426 = sphi 0, %s426
    %s428 = sphi 0, %s426
    %s429 = sphi 0, %s428
    %s443 = sphi 0, %s429
  $region4: #{encoder_forward.1} parent=0 // loop_header_branch
    %25 = sbr.rel (%p23) target = $region8
  $region5: #{encoder_forward.1} parent=0 // loop_body
    %s27 = ssub.s32 %s22, 1
    %s28 = ssub.s32 %s22, 2
    %s29 = sadd.s32 %s22, 1
    %s31 = sadd.s32 %s30, 1
    %p34 = scmp.eq.s32.totalorder %s22, 1
    %p35 = scmp.ne.s32.totalorder %s30, %s32
    %p36 = scmp.eq.s32.totalorder %s22, 0
    %p37 = por %p35, %p36
    %p38 = scmp.ne.s32.totalorder %s30, %s32
    %p39 = scmp.eq.s32.totalorder %s27, 1
    %p40 = por %p38, %p39
    %p41 = scmp.ne.s32.totalorder %s32, %s33
    %p42 = scmp.eq.s32.totalorder %s27, 0
    %p43 = por %p41, %p42
    %p44 = scmp.ne.s32.totalorder %s32, %s33
    %p45 = scmp.eq.s32.totalorder %s28, 1
    %p46 = por %p44, %p45
    %p48 = scmp.ne.s32.totalorder %s33, %s47
    %p49 = scmp.eq.s32.totalorder %s28, 0
    %p50 = por %p48, %p49
    %s52 = sadd.s32 %s51, 1
    %p55 = scmp.eq.s32.totalorder %s22, 1
    %p56 = scmp.ne.s32.totalorder %s51, %s53
    %p57 = scmp.eq.s32.totalorder %s22, 0
    %p58 = por %p56, %p57
    %p59 = scmp.ne.s32.totalorder %s51, %s53
    %p60 = scmp.eq.s32.totalorder %s27, 1
    %p61 = por %p59, %p60
    %p62 = scmp.ne.s32.totalorder %s53, %s54
    %p63 = scmp.eq.s32.totalorder %s27, 0
    %p64 = por %p62, %p63
    %p65 = scmp.ne.s32.totalorder %s53, %s54
    %p66 = scmp.eq.s32.totalorder %s28, 1
    %p67 = por %p65, %p66
    %p69 = scmp.ne.s32.totalorder %s54, %s68
    %p70 = scmp.eq.s32.totalorder %s28, 0
    %p71 = por %p69, %p70
    %s72 = ssub.s32 %s22, %s29
    %p73 = scmp.eq.s32.totalorder %s72, 0
    %s75 = sadd.s32 %s74, 1
    %s76 = scalar_select %p73, %s74, %s75
    %p79 = pneg %p73
    %p80 = scmp.eq.s32.totalorder %s22, 1
    %p81 = por %p79, %p80
    %p82 = scmp.ne.s32.totalorder %s74, %s77
    %p83 = scmp.eq.s32.totalorder %s22, 0
    %p84 = por %p82, %p83
    %p85 = scmp.ne.s32.totalorder %s74, %s77
    %p86 = scmp.eq.s32.totalorder %s27, 1
    %p87 = por %p85, %p86
    %p88 = scmp.ne.s32.totalorder %s77, %s78
    %p89 = scmp.eq.s32.totalorder %s27, 0
    %p90 = por %p88, %p89
    %p91 = scmp.ne.s32.totalorder %s77, %s78
    %p92 = scmp.eq.s32.totalorder %s28, 1
    %p93 = por %p91, %p92
    %p95 = scmp.ne.s32.totalorder %s78, %s94
    %p96 = scmp.eq.s32.totalorder %s28, 0
    %p97 = por %p95, %p96
    %s98 = ssub.s32 %s22, %s29
    %p99 = scmp.eq.s32.totalorder %s98, 0
    %s101 = sadd.s32 %s100, 1
    %s102 = scalar_select %p99, %s100, %s101
    %p105 = pneg %p99
    %p106 = scmp.eq.s32.totalorder %s22, 1
    %p107 = por %p105, %p106
    %p108 = scmp.ne.s32.totalorder %s100, %s103
    %p109 = scmp.eq.s32.totalorder %s22, 0
    %p110 = por %p108, %p109
    %p111 = scmp.ne.s32.totalorder %s100, %s103
    %p112 = scmp.eq.s32.totalorder %s27, 1
    %p113 = por %p111, %p112
    %p114 = scmp.ne.s32.totalorder %s103, %s104
    %p115 = scmp.eq.s32.totalorder %s27, 0
    %p116 = por %p114, %p115
    %p117 = scmp.ne.s32.totalorder %s103, %s104
    %p118 = scmp.eq.s32.totalorder %s28, 1
    %p119 = por %p117, %p118
    %p121 = scmp.ne.s32.totalorder %s104, %s120
    %p122 = scmp.eq.s32.totalorder %s28, 0
    %p123 = por %p121, %p122
    %s124 = ssub.s32 %s22, %s29
    %p125 = scmp.eq.s32.totalorder %s124, 0
    %s127 = sadd.s32 %s126, 1
    %s128 = scalar_select %p125, %s126, %s127
    %p131 = pneg %p125
    %p132 = scmp.eq.s32.totalorder %s22, 1
    %p133 = por %p131, %p132
    %p134 = scmp.ne.s32.totalorder %s126, %s129
    %p135 = scmp.eq.s32.totalorder %s22, 0
    %p136 = por %p134, %p135
    %p137 = scmp.ne.s32.totalorder %s126, %s129
    %p138 = scmp.eq.s32.totalorder %s27, 1
    %p139 = por %p137, %p138
    %p140 = scmp.ne.s32.totalorder %s129, %s130
    %p141 = scmp.eq.s32.totalorder %s27, 0
    %p142 = por %p140, %p141
    %p143 = scmp.ne.s32.totalorder %s129, %s130
    %p144 = scmp.eq.s32.totalorder %s28, 1
    %p145 = por %p143, %p144
    %p147 = scmp.ne.s32.totalorder %s130, %s146
    %p148 = scmp.eq.s32.totalorder %s28, 0
    %p149 = por %p147, %p148
    %s150 = ssub.s32 %s22, %s29
    %p151 = scmp.eq.s32.totalorder %s150, 0
    %s153 = sadd.s32 %s152, 1
    %s154 = scalar_select %p151, %s152, %s153
    %p157 = pneg %p151
    %p158 = scmp.eq.s32.totalorder %s22, 1
    %p159 = por %p157, %p158
    %p160 = scmp.ne.s32.totalorder %s152, %s155
    %p161 = scmp.eq.s32.totalorder %s22, 0
    %p162 = por %p160, %p161
    %p163 = scmp.ne.s32.totalorder %s152, %s155
    %p164 = scmp.eq.s32.totalorder %s27, 1
    %p165 = por %p163, %p164
    %p166 = scmp.ne.s32.totalorder %s155, %s156
    %p167 = scmp.eq.s32.totalorder %s27, 0
    %p168 = por %p166, %p167
    %p169 = scmp.ne.s32.totalorder %s155, %s156
    %p170 = scmp.eq.s32.totalorder %s28, 1
    %p171 = por %p169, %p170
    %p173 = scmp.ne.s32.totalorder %s156, %s172
    %p174 = scmp.eq.s32.totalorder %s28, 0
    %p175 = por %p173, %p174
    %s176 = ssub.s32 %s22, %s29
    %p177 = scmp.eq.s32.totalorder %s176, 0
    %s179 = sadd.s32 %s178, 1
    %s180 = scalar_select %p177, %s178, %s179
    %p183 = pneg %p177
    %p184 = scmp.eq.s32.totalorder %s22, 1
    %p185 = por %p183, %p184
    %p186 = scmp.ne.s32.totalorder %s178, %s181
    %p187 = scmp.eq.s32.totalorder %s22, 0
    %p188 = por %p186, %p187
    %p189 = scmp.ne.s32.totalorder %s178, %s181
    %p190 = scmp.eq.s32.totalorder %s27, 1
    %p191 = por %p189, %p190
    %p192 = scmp.ne.s32.totalorder %s181, %s182
    %p193 = scmp.eq.s32.totalorder %s27, 0
    %p194 = por %p192, %p193
    %p195 = scmp.ne.s32.totalorder %s181, %s182
    %p196 = scmp.eq.s32.totalorder %s28, 1
    %p197 = por %p195, %p196
    %p199 = scmp.ne.s32.totalorder %s182, %s198
    %p200 = scmp.eq.s32.totalorder %s28, 0
    %p201 = por %p199, %p200
    %s202 = ssub.s32 %s22, %s29
    %p203 = scmp.eq.s32.totalorder %s202, 0
    %s205 = sadd.s32 %s204, 1
    %s206 = scalar_select %p203, %s204, %s205
    %p209 = pneg %p203
    %p210 = scmp.eq.s32.totalorder %s22, 1
    %p211 = por %p209, %p210
    %p212 = scmp.ne.s32.totalorder %s204, %s207
    %p213 = scmp.eq.s32.totalorder %s22, 0
    %p214 = por %p212, %p213
    %p215 = scmp.ne.s32.totalorder %s204, %s207
    %p216 = scmp.eq.s32.totalorder %s27, 1
    %p217 = por %p215, %p216
    %p218 = scmp.ne.s32.totalorder %s207, %s208
    %p219 = scmp.eq.s32.totalorder %s27, 0
    %p220 = por %p218, %p219
    %p221 = scmp.ne.s32.totalorder %s207, %s208
    %p222 = scmp.eq.s32.totalorder %s28, 1
    %p223 = por %p221, %p222
    %p225 = scmp.ne.s32.totalorder %s208, %s224
    %p226 = scmp.eq.s32.totalorder %s28, 0
    %p227 = por %p225, %p226
    %s228 = ssub.s32 %s22, %s29
    %p229 = scmp.eq.s32.totalorder %s228, 0
    %s231 = sadd.s32 %s230, 1
    %s232 = scalar_select %p229, %s230, %s231
    %p235 = pneg %p229
    %p236 = scmp.eq.s32.totalorder %s22, 1
    %p237 = por %p235, %p236
    %p238 = scmp.ne.s32.totalorder %s230, %s233
    %p239 = scmp.eq.s32.totalorder %s22, 0
    %p240 = por %p238, %p239
    %p241 = scmp.ne.s32.totalorder %s230, %s233
    %p242 = scmp.eq.s32.totalorder %s27, 1
    %p243 = por %p241, %p242
    %p244 = scmp.ne.s32.totalorder %s233, %s234
    %p245 = scmp.eq.s32.totalorder %s27, 0
    %p246 = por %p244, %p245
    %p247 = scmp.ne.s32.totalorder %s233, %s234
    %p248 = scmp.eq.s32.totalorder %s28, 1
    %p249 = por %p247, %p248
    %p251 = scmp.ne.s32.totalorder %s234, %s250
    %p252 = scmp.eq.s32.totalorder %s28, 0
    %p253 = por %p251, %p252
    %s254 = ssub.s32 %s22, %s29
    %p255 = scmp.eq.s32.totalorder %s254, 0
    %s257 = sadd.s32 %s256, 1
    %s258 = scalar_select %p255, %s256, %s257
    %p261 = pneg %p255
    %p262 = scmp.eq.s32.totalorder %s22, 1
    %p263 = por %p261, %p262
    %p264 = scmp.ne.s32.totalorder %s256, %s259
    %p265 = scmp.eq.s32.totalorder %s22, 0
    %p266 = por %p264, %p265
    %p267 = scmp.ne.s32.totalorder %s256, %s259
    %p268 = scmp.eq.s32.totalorder %s27, 1
    %p269 = por %p267, %p268
    %p270 = scmp.ne.s32.totalorder %s259, %s260
    %p271 = scmp.eq.s32.totalorder %s27, 0
    %p272 = por %p270, %p271
    %p273 = scmp.ne.s32.totalorder %s259, %s260
    %p274 = scmp.eq.s32.totalorder %s28, 1
    %p275 = por %p273, %p274
    %p277 = scmp.ne.s32.totalorder %s260, %s276
    %p278 = scmp.eq.s32.totalorder %s28, 0
    %p279 = por %p277, %p278
    %s280 = ssub.s32 %s22, %s29
    %p281 = scmp.eq.s32.totalorder %s280, 0
    %s283 = sadd.s32 %s282, 1
    %s284 = scalar_select %p281, %s282, %s283
    %p287 = pneg %p281
    %p288 = scmp.eq.s32.totalorder %s22, 1
    %p289 = por %p287, %p288
    %p290 = scmp.ne.s32.totalorder %s282, %s285
    %p291 = scmp.eq.s32.totalorder %s22, 0
    %p292 = por %p290, %p291
    %p293 = scmp.ne.s32.totalorder %s282, %s285
    %p294 = scmp.eq.s32.totalorder %s27, 1
    %p295 = por %p293, %p294
    %p296 = scmp.ne.s32.totalorder %s285, %s286
    %p297 = scmp.eq.s32.totalorder %s27, 0
    %p298 = por %p296, %p297
    %p299 = scmp.ne.s32.totalorder %s285, %s286
    %p300 = scmp.eq.s32.totalorder %s28, 1
    %p301 = por %p299, %p300
    %p303 = scmp.ne.s32.totalorder %s286, %s302
    %p304 = scmp.eq.s32.totalorder %s28, 0
    %p305 = por %p303, %p304
    %s306 = ssub.s32 %s22, %s29
    %p307 = scmp.eq.s32.totalorder %s306, 0
    %s309 = sadd.s32 %s308, 1
    %s310 = scalar_select %p307, %s308, %s309
    %p313 = pneg %p307
    %p314 = scmp.eq.s32.totalorder %s22, 1
    %p315 = por %p313, %p314
    %p316 = scmp.ne.s32.totalorder %s308, %s311
    %p317 = scmp.eq.s32.totalorder %s22, 0
    %p318 = por %p316, %p317
    %p319 = scmp.ne.s32.totalorder %s308, %s311
    %p320 = scmp.eq.s32.totalorder %s27, 1
    %p321 = por %p319, %p320
    %p322 = scmp.ne.s32.totalorder %s311, %s312
    %p323 = scmp.eq.s32.totalorder %s27, 0
    %p324 = por %p322, %p323
    %p325 = scmp.ne.s32.totalorder %s311, %s312
    %p326 = scmp.eq.s32.totalorder %s28, 1
    %p327 = por %p325, %p326
    %p329 = scmp.ne.s32.totalorder %s312, %s328
    %p330 = scmp.eq.s32.totalorder %s28, 0
    %p331 = por %p329, %p330
    %s332 = ssub.s32 %s22, %s29
    %p333 = scmp.eq.s32.totalorder %s332, 0
    %s335 = sadd.s32 %s334, 1
    %s336 = scalar_select %p333, %s334, %s335
    %p339 = pneg %p333
    %p340 = scmp.eq.s32.totalorder %s22, 1
    %p341 = por %p339, %p340
    %p342 = scmp.ne.s32.totalorder %s334, %s337
    %p343 = scmp.eq.s32.totalorder %s22, 0
    %p344 = por %p342, %p343
    %p345 = scmp.ne.s32.totalorder %s334, %s337
    %p346 = scmp.eq.s32.totalorder %s27, 1
    %p347 = por %p345, %p346
    %p348 = scmp.ne.s32.totalorder %s337, %s338
    %p349 = scmp.eq.s32.totalorder %s27, 0
    %p350 = por %p348, %p349
    %p351 = scmp.ne.s32.totalorder %s337, %s338
    %p352 = scmp.eq.s32.totalorder %s28, 1
    %p353 = por %p351, %p352
    %p355 = scmp.ne.s32.totalorder %s338, %s354
    %p356 = scmp.eq.s32.totalorder %s28, 0
    %p357 = por %p355, %p356
    %s358 = ssub.s32 %s22, %s29
    %p359 = scmp.eq.s32.totalorder %s358, 0
    %s361 = sadd.s32 %s360, 1
    %s362 = scalar_select %p359, %s360, %s361
    %p365 = pneg %p359
    %p366 = scmp.eq.s32.totalorder %s22, 1
    %p367 = por %p365, %p366
    %p368 = scmp.ne.s32.totalorder %s360, %s363
    %p369 = scmp.eq.s32.totalorder %s22, 0
    %p370 = por %p368, %p369
    %p371 = scmp.ne.s32.totalorder %s360, %s363
    %p372 = scmp.eq.s32.totalorder %s27, 1
    %p373 = por %p371, %p372
    %p374 = scmp.ne.s32.totalorder %s363, %s364
    %p375 = scmp.eq.s32.totalorder %s27, 0
    %p376 = por %p374, %p375
    %p377 = scmp.ne.s32.totalorder %s363, %s364
    %p378 = scmp.eq.s32.totalorder %s28, 1
    %p379 = por %p377, %p378
    %p381 = scmp.ne.s32.totalorder %s364, %s380
    %p382 = scmp.eq.s32.totalorder %s28, 0
    %p383 = por %p381, %p382
    %s385 = sadd.s32 %s384, 1
    %p388 = scmp.eq.s32.totalorder %s22, 1
    %p389 = scmp.ne.s32.totalorder %s384, %s386
    %p390 = scmp.eq.s32.totalorder %s22, 0
    %p391 = por %p389, %p390
    %p392 = scmp.ne.s32.totalorder %s384, %s386
    %p393 = scmp.eq.s32.totalorder %s27, 1
    %p394 = por %p392, %p393
    %p395 = scmp.ne.s32.totalorder %s386, %s387
    %p396 = scmp.eq.s32.totalorder %s27, 0
    %p397 = por %p395, %p396
    %p398 = scmp.ne.s32.totalorder %s386, %s387
    %p399 = scmp.eq.s32.totalorder %s28, 1
    %p400 = por %p398, %p399
    %p402 = scmp.ne.s32.totalorder %s387, %s401
    %p403 = scmp.eq.s32.totalorder %s28, 0
    %p404 = por %p402, %p403
    %s406 = sadd.s32 %s405, 1
    %p409 = scmp.eq.s32.totalorder %s22, 1
    %p410 = scmp.ne.s32.totalorder %s405, %s407
    %p411 = scmp.eq.s32.totalorder %s22, 0
    %p412 = por %p410, %p411
    %p413 = scmp.ne.s32.totalorder %s405, %s407
    %p414 = scmp.eq.s32.totalorder %s27, 1
    %p415 = por %p413, %p414
    %p416 = scmp.ne.s32.totalorder %s407, %s408
    %p417 = scmp.eq.s32.totalorder %s27, 0
    %p418 = por %p416, %p417
    %p419 = scmp.ne.s32.totalorder %s407, %s408
    %p420 = scmp.eq.s32.totalorder %s28, 1
    %p421 = por %p419, %p420
    %p423 = scmp.ne.s32.totalorder %s408, %s422
    %p424 = scmp.eq.s32.totalorder %s28, 0
    %p425 = por %p423, %p424
    %s427 = sadd.s32 %s426, 1
    %p430 = scmp.eq.s32.totalorder %s22, 1
    %p431 = scmp.ne.s32.totalorder %s426, %s428
    %p432 = scmp.eq.s32.totalorder %s22, 0
    %p433 = por %p431, %p432
    %p434 = scmp.ne.s32.totalorder %s426, %s428
    %p435 = scmp.eq.s32.totalorder %s27, 1
    %p436 = por %p434, %p435
    %p437 = scmp.ne.s32.totalorder %s428, %s429
    %p438 = scmp.eq.s32.totalorder %s27, 0
    %p439 = por %p437, %p438
    %p440 = scmp.ne.s32.totalorder %s428, %s429
    %p441 = scmp.eq.s32.totalorder %s28, 1
    %p442 = por %p440, %p441
    %p444 = scmp.ne.s32.totalorder %s429, %s443
    %p445 = scmp.eq.s32.totalorder %s28, 0
    %p446 = por %p444, %p445
    %p447 = scmp.le.s32.totalorder 1, %s22
    %p448 = scmp.lt.s32.totalorder %s22, 3
    %p449 = pnand %p447, %p448
    %p450 = pneg %p449
    // Predicated region
    $region9: #{encoder_forward.1} parent=5 // pred_check
      _
    $region10: #{encoder_forward.1} parent=5 // pred_check_branch
      %452 = sbr.rel (%p449) target = $region12
    $region11: #{encoder_forward.1} parent=5 // pred_region
      %s453 = ssub.s32 %s22, 1
      // Predicated region
      $region13: #{encoder_forward.1} parent=11 // pred_check
        %p454 = pneg %p43
      $region14: #{encoder_forward.1} parent=11 // pred_check_branch
        %456 = sbr.rel (%p454) target = $region16
      $region15: #{encoder_forward.1} parent=11 // pred_region
        _
      $region16: #{encoder_forward.1} parent=11 // pred_fallthru
        _
      // Predicated region
      $region17: #{encoder_forward.1} parent=11 // pred_check
        %p457 = pneg %p64
      $region18: #{encoder_forward.1} parent=11 // pred_check_branch
        %459 = sbr.rel (%p457) target = $region20
      $region19: #{encoder_forward.1} parent=11 // pred_region
        _
      $region20: #{encoder_forward.1} parent=11 // pred_fallthru
        _
      // Predicated region
      $region21: #{encoder_forward.1} parent=11 // pred_check
        %p460 = pneg %p397
      $region22: #{encoder_forward.1} parent=11 // pred_check_branch
        %462 = sbr.rel (%p460) target = $region24
      $region23: #{encoder_forward.1} parent=11 // pred_region
        _
      $region24: #{encoder_forward.1} parent=11 // pred_fallthru
        _
      // Predicated region
      $region25: #{encoder_forward.1} parent=11 // pred_check
        %p463 = pneg %p418
      $region26: #{encoder_forward.1} parent=11 // pred_check_branch
        %465 = sbr.rel (%p463) target = $region28
      $region27: #{encoder_forward.1} parent=11 // pred_region
        _
      $region28: #{encoder_forward.1} parent=11 // pred_fallthru
        _
    $region12: #{encoder_forward.1} parent=5 // pred_fallthru
      _
    %p466 = scmp.lt.s32.totalorder %s22, 2
    // Predicated region
    $region29: #{encoder_forward.1} parent=5 // pred_check
      %p467 = pneg %p466
    $region30: #{encoder_forward.1} parent=5 // pred_check_branch
      %469 = sbr.rel (%p467) target = $region32
    $region31: #{encoder_forward.1} parent=5 // pred_region
      // Predicated region
      $region33: #{encoder_forward.1} parent=31 // pred_check
        %p470 = pneg %p84
      $region34: #{encoder_forward.1} parent=31 // pred_check_branch
        %472 = sbr.rel (%p470) target = $region36
      $region35: #{encoder_forward.1} parent=31 // pred_region
        %p473 = scmp.lt.s32.totalorder %s22, 1
        %s474 = scalar_select %p473, %s22, 1
        %s475 = scalar_lea.vmem %s2, %s474
      $region36: #{encoder_forward.1} parent=31 // pred_fallthru
        _
      // Predicated region
      $region37: #{encoder_forward.1} parent=31 // pred_check
        %p476 = pneg %p110
      $region38: #{encoder_forward.1} parent=31 // pred_check_branch
        %478 = sbr.rel (%p476) target = $region40
      $region39: #{encoder_forward.1} parent=31 // pred_region
        %p479 = scmp.lt.s32.totalorder %s22, 1
        %s480 = scalar_select %p479, %s22, 1
        %s481 = scalar_lea.vmem %s3, %s480
      $region40: #{encoder_forward.1} parent=31 // pred_fallthru
        _
      // Predicated region
      $region41: #{encoder_forward.1} parent=31 // pred_check
        %p482 = pneg %p136
      $region42: #{encoder_forward.1} parent=31 // pred_check_branch
        %484 = sbr.rel (%p482) target = $region44
      $region43: #{encoder_forward.1} parent=31 // pred_region
        %p485 = scmp.lt.s32.totalorder %s22, 1
        %s486 = scalar_select %p485, %s22, 1
        %s487 = smul.addr %s486, 4
        %s488 = smul.addr %s487, 4
        %s489 = scalar_lea.vmem %s4, %s488
      $region44: #{encoder_forward.1} parent=31 // pred_fallthru
        _
      // Predicated region
      $region45: #{encoder_forward.1} parent=31 // pred_check
        %p490 = pneg %p162
      $region46: #{encoder_forward.1} parent=31 // pred_check_branch
        %492 = sbr.rel (%p490) target = $region48
      $region47: #{encoder_forward.1} parent=31 // pred_region
        %p493 = scmp.lt.s32.totalorder %s22, 1
        %s494 = scalar_select %p493, %s22, 1
        %s495 = scalar_lea.vmem %s5, %s494
      $region48: #{encoder_forward.1} parent=31 // pred_fallthru
        _
      // Predicated region
      $region49: #{encoder_forward.1} parent=31 // pred_check
        %p496 = pneg %p188
      $region50: #{encoder_forward.1} parent=31 // pred_check_branch
        %498 = sbr.rel (%p496) target = $region52
      $region51: #{encoder_forward.1} parent=31 // pred_region
        %p499 = scmp.lt.s32.totalorder %s22, 1
        %s500 = scalar_select %p499, %s22, 1
        %s501 = smul.addr %s500, 4
        %s502 = smul.addr %s501, 4
        %s503 = scalar_lea.vmem %s6, %s502
      $region52: #{encoder_forward.1} parent=31 // pred_fallthru
        _
      // Predicated region
      $region53: #{encoder_forward.1} parent=31 // pred_check
        %p504 = pneg %p214
      $region54: #{encoder_forward.1} parent=31 // pred_check_branch
        %506 = sbr.rel (%p504) target = $region56
      $region55: #{encoder_forward.1} parent=31 // pred_region
        %p507 = scmp.lt.s32.totalorder %s22, 1
        %s508 = scalar_select %p507, %s22, 1
        %s509 = scalar_lea.vmem %s7, %s508
      $region56: #{encoder_forward.1} parent=31 // pred_fallthru
        _
      // Predicated region
      $region57: #{encoder_forward.1} parent=31 // pred_check
        %p510 = pneg %p240
      $region58: #{encoder_forward.1} parent=31 // pred_check_branch
        %512 = sbr.rel (%p510) target = $region60
      $region59: #{encoder_forward.1} parent=31 // pred_region
        %p513 = scmp.lt.s32.totalorder %s22, 1
        %s514 = scalar_select %p513, %s22, 1
        %s515 = scalar_lea.vmem %s8, %s514
      $region60: #{encoder_forward.1} parent=31 // pred_fallthru
        _
      // Predicated region
      $region61: #{encoder_forward.1} parent=31 // pred_check
        %p516 = pneg %p266
      $region62: #{encoder_forward.1} parent=31 // pred_check_branch
        %518 = sbr.rel (%p516) target = $region64
      $region63: #{encoder_forward.1} parent=31 // pred_region
        %p519 = scmp.lt.s32.totalorder %s22, 1
        %s520 = scalar_select %p519, %s22, 1
        %s521 = scalar_lea.vmem %s9, %s520
      $region64: #{encoder_forward.1} parent=31 // pred_fallthru
        _
      // Predicated region
      $region65: #{encoder_forward.1} parent=31 // pred_check
        %p522 = pneg %p292
      $region66: #{encoder_forward.1} parent=31 // pred_check_branch
        %524 = sbr.rel (%p522) target = $region68
      $region67: #{encoder_forward.1} parent=31 // pred_region
        %p525 = scmp.lt.s32.totalorder %s22, 1
        %s526 = scalar_select %p525, %s22, 1
        %s527 = smul.addr %s526, 4
        %s528 = smul.addr %s527, 4
        %s529 = scalar_lea.vmem %s10, %s528
      $region68: #{encoder_forward.1} parent=31 // pred_fallthru
        _
      // Predicated region
      $region69: #{encoder_forward.1} parent=31 // pred_check
        %p530 = pneg %p318
      $region70: #{encoder_forward.1} parent=31 // pred_check_branch
        %532 = sbr.rel (%p530) target = $region72
      $region71: #{encoder_forward.1} parent=31 // pred_region
        %p533 = scmp.lt.s32.totalorder %s22, 1
        %s534 = scalar_select %p533, %s22, 1
        %s535 = scalar_lea.vmem %s11, %s534
      $region72: #{encoder_forward.1} parent=31 // pred_fallthru
        _
      // Predicated region
      $region73: #{encoder_forward.1} parent=31 // pred_check
        %p536 = pneg %p344
      $region74: #{encoder_forward.1} parent=31 // pred_check_branch
        %538 = sbr.rel (%p536) target = $region76
      $region75: #{encoder_forward.1} parent=31 // pred_region
        %p539 = scmp.lt.s32.totalorder %s22, 1
        %s540 = scalar_select %p539, %s22, 1
        %s541 = smul.addr %s540, 8
        %s542 = smul.addr %s541, 4
        %s543 = scalar_lea.vmem %s12, %s542
      $region76: #{encoder_forward.1} parent=31 // pred_fallthru
        _
      // Predicated region
      $region77: #{encoder_forward.1} parent=31 // pred_check
        %p544 = pneg %p370
      $region78: #{encoder_forward.1} parent=31 // pred_check_branch
        %546 = sbr.rel (%p544) target = $region80
      $region79: #{encoder_forward.1} parent=31 // pred_region
        %p547 = scmp.lt.s32.totalorder %s22, 1
        %s548 = scalar_select %p547, %s22, 1
        %s549 = scalar_lea.vmem %s13, %s548
      $region80: #{encoder_forward.1} parent=31 // pred_fallthru
        _
    $region32: #{encoder_forward.1} parent=5 // pred_fallthru
      _
    %p550 = scmp.le.s32.totalorder 1, %s22
    %p551 = scmp.lt.s32.totalorder %s22, 3
    %p552 = pnand %p550, %p551
    %p553 = pneg %p552
    // Predicated region
    $region81: #{encoder_forward.1} parent=5 // pred_check
      _
    $region82: #{encoder_forward.1} parent=5 // pred_check_branch
      %555 = sbr.rel (%p552) target = $region84
    $region83: #{encoder_forward.1} parent=5 // pred_region
      %s556 = ssub.s32 %s22, 1
      %p557 = pneg %p43
      %p558 = pneg %p40
      %p559 = pneg %p64
      %p560 = pneg %p61
      %p561 = scmp.lt.s32.totalorder %s27, 1
      %s562 = scalar_select %p561, %s27, 1
      %s563 = scalar_lea.vmem %s2, %s562
      %p564 = pneg %p90
      %p565 = pneg %p87
      %p566 = scmp.lt.s32.totalorder %s27, 1
      %s567 = scalar_select %p566, %s27, 1
      %s568 = scalar_lea.vmem %s3, %s567
      %p569 = pneg %p116
      %p570 = pneg %p113
      %p571 = scmp.lt.s32.totalorder %s27, 1
      %s572 = scalar_select %p571, %s27, 1
      %s573 = smul.addr %s572, 4
      %s574 = smul.addr %s573, 4
      %s575 = scalar_lea.vmem %s4, %s574
      %p576 = pneg %p142
      %p577 = pneg %p139
      %p578 = scmp.lt.s32.totalorder %s27, 1
      %s579 = scalar_select %p578, %s27, 1
      %s580 = scalar_lea.vmem %s5, %s579
      %p581 = pneg %p168
      %p582 = pneg %p165
      %p583 = scmp.lt.s32.totalorder %s27, 1
      %s584 = scalar_select %p583, %s27, 1
      %s585 = smul.addr %s584, 4
      %s586 = smul.addr %s585, 4
      %s587 = scalar_lea.vmem %s6, %s586
      %p588 = pneg %p194
      %p589 = pneg %p191
      %p590 = scmp.lt.s32.totalorder %s27, 1
      %s591 = scalar_select %p590, %s27, 1
      %s592 = scalar_lea.vmem %s7, %s591
      %p593 = pneg %p220
      %p594 = pneg %p217
      %p595 = scmp.lt.s32.totalorder %s27, 1
      %s596 = scalar_select %p595, %s27, 1
      %s597 = scalar_lea.vmem %s8, %s596
      %p598 = pneg %p246
      %p599 = pneg %p243
      %p600 = scmp.lt.s32.totalorder %s27, 1
      %s601 = scalar_select %p600, %s27, 1
      %s602 = scalar_lea.vmem %s9, %s601
      %p603 = pneg %p272
      %p604 = pneg %p269
      %p605 = scmp.lt.s32.totalorder %s27, 1
      %s606 = scalar_select %p605, %s27, 1
      %s607 = smul.addr %s606, 4
      %s608 = smul.addr %s607, 4
      %s609 = scalar_lea.vmem %s10, %s608
      %p610 = pneg %p298
      %p611 = pneg %p295
      %p612 = scmp.lt.s32.totalorder %s27, 1
      %s613 = scalar_select %p612, %s27, 1
      %s614 = scalar_lea.vmem %s11, %s613
      %p615 = pneg %p324
      %p616 = pneg %p321
      %p617 = scmp.lt.s32.totalorder %s27, 1
      %s618 = scalar_select %p617, %s27, 1
      %s619 = smul.addr %s618, 8
      %s620 = smul.addr %s619, 4
      %s621 = scalar_lea.vmem %s12, %s620
      %p622 = pneg %p350
      %p623 = pneg %p347
      %p624 = scmp.lt.s32.totalorder %s27, 1
      %s625 = scalar_select %p624, %s27, 1
      %s626 = scalar_lea.vmem %s13, %s625
      %p627 = pneg %p376
      %p628 = pneg %p373
      %p629 = pneg %p397
      %p630 = pneg %p394
      %p631 = pneg %p418
      %p632 = pneg %p415
      %p633 = pneg %p439
      %p634 = pneg %p436
      %p635 = scmp.lt.s32.totalorder %s27, 1
      %s636 = scalar_select %p635, %s27, 1
      %s637 = scalar_lea.vmem %s2, %s636
      %p638 = scmp.lt.s32.totalorder %s27, 1
      %s639 = scalar_select %p638, %s27, 1
      %s640 = scalar_lea.vmem %s3, %s639
      %p641 = scmp.lt.s32.totalorder %s27, 1
      %s642 = scalar_select %p641, %s27, 1
      %s643 = smul.addr %s642, 4
      %s644 = smul.addr %s643, 4
      %s645 = scalar_lea.vmem %s4, %s644
      %p646 = scmp.lt.s32.totalorder %s27, 1
      %s647 = scalar_select %p646, %s27, 1
      %s648 = scalar_lea.vmem %s5, %s647
      %p649 = scmp.lt.s32.totalorder %s27, 1
      %s650 = scalar_select %p649, %s27, 1
      %s651 = smul.addr %s650, 4
      %s652 = smul.addr %s651, 4
      %s653 = scalar_lea.vmem %s6, %s652
      %p654 = scmp.lt.s32.totalorder %s27, 1
      %s655 = scalar_select %p654, %s27, 1
      %s656 = scalar_lea.vmem %s7, %s655
      %p657 = scmp.lt.s32.totalorder %s27, 1
      %s658 = scalar_select %p657, %s27, 1
      %s659 = scalar_lea.vmem %s8, %s658
      %p660 = scmp.lt.s32.totalorder %s27, 1
      %s661 = scalar_select %p660, %s27, 1
      %s662 = scalar_lea.vmem %s9, %s661
      %p663 = scmp.lt.s32.totalorder %s27, 1
      %s664 = scalar_select %p663, %s27, 1
      %s665 = smul.addr %s664, 4
      %s666 = smul.addr %s665, 4
      %s667 = scalar_lea.vmem %s10, %s666
      %p668 = scmp.lt.s32.totalorder %s27, 1
      %s669 = scalar_select %p668, %s27, 1
      %s670 = scalar_lea.vmem %s11, %s669
      %p671 = scmp.lt.s32.totalorder %s27, 1
      %s672 = scalar_select %p671, %s27, 1
      %s673 = smul.addr %s672, 8
      %s674 = smul.addr %s673, 4
      %s675 = scalar_lea.vmem %s12, %s674
      %p676 = scmp.lt.s32.totalorder %s27, 1
      %s677 = scalar_select %p676, %s27, 1
      %s678 = scalar_lea.vmem %s13, %s677
      %p680 = scmp.eq.s32.totalorder %s27, 0
      // Predicated region
      $region85: #{encoder_forward.1} parent=83 // pred_check
        %p681 = pneg %p680
      $region86: #{encoder_forward.1} parent=83 // pred_check_branch
        %683 = sbr.rel (%p681) target = $region88
      $region87: #{encoder_forward.1} parent=83 // pred_region
        %v684 = vld [vmem:[%s0] sm:$0xff]
        %v685 = vld [vmem:[%s0 + $0x8] sm:$0xff]
        %vm686 = vcmask 261120
        %687 = vst.msk [vmem:[%s16] sm:$0xff] %vm686, %v684
        %688 = vst.msk [vmem:[%s16 + $0x8] sm:$0xff] %vm686, %v685
      $region88: #{encoder_forward.1} parent=83 // pred_fallthru
        _
      %v689 = vld [vmem:[%s16] sm:$0xff]
      %v690 = vld [vmem:[%s16 + $0x8] sm:$0xff]
      %v691 = vld [vmem:[%s637] sm:$0x1]
      %v692 = vld [vmem:[%s640] sm:$0x1]
      %vm693 = vcmask 261120
      %v694 = vsel %vm693, %v689, 0.0
      %695 = vadd.xlane.f32.xlu0 %v694
      %v696 = vpop.xlane.xlu0 %695
      %v697 = vsel %vm693, %v690, 0.0
      %698 = vadd.xlane.f32.xlu0 %v697
      %v699 = vpop.xlane.xlu0 %698
      %v700 = vrcp.pop 32.0
      %v701 = vmul.f32 %v696, %v700
      %v702 = vmul.f32 %v699, %v700
      %v703 = vsub.f32 %v689, %v701
      %v704 = vsub.f32 %v690, %v702
      %v705 = vmul.f32 %v703, %v703
      %v706 = vmul.f32 %v704, %v704
      %v707 = vsel %vm693, %v705, 0.0
      %708 = vadd.xlane.f32.xlu0 %v707
      %v709 = vpop.xlane.xlu0 %708
      %v710 = vsel %vm693, %v706, 0.0
      %711 = vadd.xlane.f32.xlu0 %v710
      %v712 = vpop.xlane.xlu0 %711
      %v713 = vmul.f32 %v709, 0.032258064
      %v714 = vmul.f32 %v712, 0.032258064
      %v716 = vlaneseq
      %v717 = vshrl.u32 %v716, 7
      %v718 = vsub.s32 0, %v717
      %v719 = vrot.slane %v691, %v718
      %v721 = vmul.f32 %v719, %v703
      %v722 = vmul.f32 %v719, %v704
      %v723 = vrsqrt.pop %v713
      %v724 = vmul.f32 %v713, %v723
      %vm725 = vcmp.eq.f32.partialorder %v713, inf
      %v726 = vsel %vm725, %v713, %v724
      %vm727 = vcmp.eq.f32.partialorder %v713, 0.0
      %v728 = vand.u32 %v713, 2147483648
      %v729 = vsel %vm727, %v728, %v726
      %v730 = vrsqrt.pop %v714
      %v731 = vmul.f32 %v714, %v730
      %vm732 = vcmp.eq.f32.partialorder %v714, inf
      %v733 = vsel %vm732, %v714, %v731
      %vm734 = vcmp.eq.f32.partialorder %v714, 0.0
      %v735 = vand.u32 %v714, 2147483648
      %v736 = vsel %vm734, %v735, %v733
      %v737 = vadd.f32 %v729, 1e-06
      %v738 = vadd.f32 %v736, 1e-06
      %v739 = vrcp.pop %v737
      %v740 = vmul.f32 1.0, %v739
      %v741 = vrcp.pop %v738
      %v742 = vmul.f32 1.0, %v741
      %v743 = vmul.f32 %v721, %v740
      %v744 = vmul.f32 %v722, %v742
      %v746 = vlaneseq
      %v747 = vshrl.u32 %v746, 7
      %v748 = vsub.s32 0, %v747
      %v749 = vrot.slane %v692, %v748
      %v751 = vadd.f32 %v743, %v749
      %v752 = vadd.f32 %v744, %v749
      %v753 = vpack.c.bf16 %v752, %v751
      %v754 = vld [vmem:[%s645] sm:$0xf]
      %v755 = vld [vmem:[%s645 + $0x4] sm:$0xf]
      %v756 = vld [vmem:[%s645 + $0x8] sm:$0xf]
      %v757 = vld [vmem:[%s645 + $0xc] sm:$0xf]
      %v758 = vld [vmem:[%s648] sm:$0x1]
      %v760 = vlaneseq
      %v761 = vshrl.u32 %v760, 7
      %v762 = vsub.s32 0, %v761
      %v763 = vrot.slane %v758, %v762
      %v769 = vunpack.c.l.b16 %v754
      %v770 = vunpack.c.l.b16 %v755
      %v771 = vunpack.c.l.b16 %v756
      %v772 = vunpack.c.l.b16 %v757
      %v773 = vpack.c.b16 %v770, %v769
      %v774 = vpack.c.b16 %v772, %v771
      %v778 = vsel %vm693, %v753, 0
      %780 = vmatprep.subr.bf16.mxu0 0
      %781 = vmatpush1.bf16.msra.mxu0 %v773
      %782 = vmatprep.subr.bf16.mxu0 0
      %783 = vmatpush1.bf16.msra.mxu0 %v774
      %784 = vmatprep.subr.bf16.mxu0 0
      %785 = vmatpush1.bf16.msra.mxu0 0
      %786 = vmatprep.subr.bf16.mxu0 0
      %787 = vmatpush1.bf16.msra.mxu0 0
      %788 = vmatprep.subr.bf16.mxu0 0
      %789 = vmatpush1.bf16.msra.mxu0 0
      %790 = vmatprep.subr.bf16.mxu0 0
      %791 = vmatpush1.bf16.msra.mxu0 0
      %792 = vmatprep.subr.bf16.mxu0 0
      %793 = vmatpush1.bf16.msra.mxu0 0
      %794 = vmatprep.subr.bf16.mxu0 0
      %795 = vmatpush1.bf16.msra.mxu0 0
      %796 = vmatprep.subr.bf16.mxu0 0
      %797 = vmatpush1.bf16.msra.mxu0 0
      %798 = vmatprep.subr.bf16.mxu0 0
      %799 = vmatpush1.bf16.msra.mxu0 0
      %800 = vmatprep.subr.bf16.mxu0 0
      %801 = vmatpush1.bf16.msra.mxu0 0
      %802 = vmatprep.subr.bf16.mxu0 0
      %803 = vmatpush1.bf16.msra.mxu0 0
      %804 = vmatprep.subr.bf16.mxu0 0
      %805 = vmatpush1.bf16.msra.mxu0 0
      %806 = vmatprep.subr.bf16.mxu0 0
      %807 = vmatpush1.bf16.msra.mxu0 0
      %808 = vmatprep.subr.bf16.mxu0 0
      %809 = vmatpush1.bf16.msra.mxu0 0
      %810 = vmatprep.subr.bf16.mxu0 0
      %811 = vmatpush1.bf16.msra.mxu0 0
      %812 = vmatprep.mubr.bf16.mxu0 0
      %813 = vmatmul.mubr.bf16.gmra.mrb[0].mxu0 %v778
      %v814 = vpop.f32.mrb[0].mxu0
      %v815 = vadd.f32 %v763, %v814
      %v816 = vpop.f32.mrb[0].mxu0
      %v817 = vpop.f32.mrb[0].mxu0
      %v818 = vadd.f32 %v763, %v817
      %v819 = vpop.f32.mrb[0].mxu0
      %820 = vdwg.mxu0
      %v821 = vpack.c.bf16 %v818, %v815
      %823 = vrot.lane.b32.xlu0 %v821, 96
      %v824 = vpop.permute.xlu0 %823
      %vm825 = vcmask 64512
      %v827 = vsel %vm825, %v821, 0
      %v830 = vsel %vm825, %v824, 0
      %832 = vmatprep.subr.bf16.mxu0 0
      %833 = vmatpush1.bf16.xpose.msra.mxu0 %v830
      %834 = vmatprep.subr.bf16.mxu0 0
      %835 = vmatpush1.bf16.xpose.msra.mxu0 0
      %836 = vmatprep.subr.bf16.mxu0 0
      %837 = vmatpush1.bf16.xpose.msra.mxu0 0
      %838 = vmatprep.subr.bf16.mxu0 0
      %839 = vmatpush1.bf16.xpose.msra.mxu0 0
      %840 = vmatprep.subr.bf16.mxu0 0
      %841 = vmatpush1.bf16.xpose.msra.mxu0 0
      %842 = vmatprep.subr.bf16.mxu0 0
      %843 = vmatpush1.bf16.xpose.msra.mxu0 0
      %844 = vmatprep.subr.bf16.mxu0 0
      %845 = vmatpush1.bf16.xpose.msra.mxu0 0
      %846 = vmatprep.subr.bf16.mxu0 0
      %847 = vmatpush1.bf16.xpose.msra.mxu0 0
      %848 = vmatprep.subr.bf16.mxu0 0
      %849 = vmatpush1.bf16.xpose.msra.mxu0 0
      %850 = vmatprep.subr.bf16.mxu0 0
      %851 = vmatpush1.bf16.xpose.msra.mxu0 0
      %852 = vmatprep.subr.bf16.mxu0 0
      %853 = vmatpush1.bf16.xpose.msra.mxu0 0
      %854 = vmatprep.subr.bf16.mxu0 0
      %855 = vmatpush1.bf16.xpose.msra.mxu0 0
      %856 = vmatprep.subr.bf16.mxu0 0
      %857 = vmatpush1.bf16.xpose.msra.mxu0 0
      %858 = vmatprep.subr.bf16.mxu0 0
      %859 = vmatpush1.bf16.xpose.msra.mxu0 0
      %860 = vmatprep.subr.bf16.mxu0 0
      %861 = vmatpush1.bf16.xpose.msra.mxu0 0
      %862 = vmatprep.subr.bf16.mxu0 0
      %863 = vmatpush1.bf16.xpose.msra.mxu0 0
      %864 = vmatprep.mubr.bf16.mxu0 0
      %865 = vmatmul.mubr.bf16.gmra.mrb[0].mxu0 %v827
      %v866 = vpop.f32.mrb[0].mxu0
      %v867 = vadd.f32 0.0, %v866
      %v868 = vpop.f32.mrb[0].mxu0
      %v869 = vpop.f32.mrb[0].mxu0
      %v870 = vadd.f32 0.0, %v869
      %v871 = vpop.f32.mrb[0].mxu0
      %872 = vdwg.mxu0
      %873 = vrot.lane.b32.xlu0 %v821, 120
      %v874 = vpop.permute.xlu0 %873
      %875 = vrot.lane.b32.xlu0 %v821, 88
      %v876 = vpop.permute.xlu0 %875
      %v878 = vsel %vm825, %v874, 0
      %v881 = vsel %vm825, %v876, 0
      %883 = vmatprep.subr.bf16.mxu0 0
      %884 = vmatpush1.bf16.xpose.msra.mxu0 %v881
      %885 = vmatprep.subr.bf16.mxu0 0
      %886 = vmatpush1.bf16.xpose.msra.mxu0 0
      %887 = vmatprep.subr.bf16.mxu0 0
      %888 = vmatpush1.bf16.xpose.msra.mxu0 0
      %889 = vmatprep.subr.bf16.mxu0 0
      %890 = vmatpush1.bf16.xpose.msra.mxu0 0
      %891 = vmatprep.subr.bf16.mxu0 0
      %892 = vmatpush1.bf16.xpose.msra.mxu0 0
      %893 = vmatprep.subr.bf16.mxu0 0
      %894 = vmatpush1.bf16.xpose.msra.mxu0 0
      %895 = vmatprep.subr.bf16.mxu0 0
      %896 = vmatpush1.bf16.xpose.msra.mxu0 0
      %897 = vmatprep.subr.bf16.mxu0 0
      %898 = vmatpush1.bf16.xpose.msra.mxu0 0
      %899 = vmatprep.subr.bf16.mxu0 0
      %900 = vmatpush1.bf16.xpose.msra.mxu0 0
      %901 = vmatprep.subr.bf16.mxu0 0
      %902 = vmatpush1.bf16.xpose.msra.mxu0 0
      %903 = vmatprep.subr.bf16.mxu0 0
      %904 = vmatpush1.bf16.xpose.msra.mxu0 0
      %905 = vmatprep.subr.bf16.mxu0 0
      %906 = vmatpush1.bf16.xpose.msra.mxu0 0
      %907 = vmatprep.subr.bf16.mxu0 0
      %908 = vmatpush1.bf16.xpose.msra.mxu0 0
      %909 = vmatprep.subr.bf16.mxu0 0
      %910 = vmatpush1.bf16.xpose.msra.mxu0 0
      %911 = vmatprep.subr.bf16.mxu0 0
      %912 = vmatpush1.bf16.xpose.msra.mxu0 0
      %913 = vmatprep.subr.bf16.mxu0 0
      %914 = vmatpush1.bf16.xpose.msra.mxu0 0
      %915 = vmatprep.mubr.bf16.mxu0 0
      %916 = vmatmul.mubr.bf16.gmra.mrb[0].mxu0 %v878
      %v917 = vpop.f32.mrb[0].mxu0
      %v918 = vadd.f32 0.0, %v917
      %v919 = vpop.f32.mrb[0].mxu0
      %v920 = vpop.f32.mrb[0].mxu0
      %v921 = vadd.f32 0.0, %v920
      %v922 = vpop.f32.mrb[0].mxu0
      %923 = vdwg.mxu0
      %924 = vrot.lane.b32.xlu0 %v821, 112
      %v925 = vpop.permute.xlu0 %924
      %926 = vrot.lane.b32.xlu0 %v821, 80
      %v927 = vpop.permute.xlu0 %926
      %v929 = vsel %vm825, %v925, 0
      %v932 = vsel %vm825, %v927, 0
      %934 = vmatprep.subr.bf16.mxu0 0
      %935 = vmatpush1.bf16.xpose.msra.mxu0 %v932
      %936 = vmatprep.subr.bf16.mxu0 0
      %937 = vmatpush1.bf16.xpose.msra.mxu0 0
      %938 = vmatprep.subr.bf16.mxu0 0
      %939 = vmatpush1.bf16.xpose.msra.mxu0 0
      %940 = vmatprep.subr.bf16.mxu0 0
      %941 = vmatpush1.bf16.xpose.msra.mxu0 0
      %942 = vmatprep.subr.bf16.mxu0 0
      %943 = vmatpush1.bf16.xpose.msra.mxu0 0
      %944 = vmatprep.subr.bf16.mxu0 0
      %945 = vmatpush1.bf16.xpose.msra.mxu0 0
      %946 = vmatprep.subr.bf16.mxu0 0
      %947 = vmatpush1.bf16.xpose.msra.mxu0 0
      %948 = vmatprep.subr.bf16.mxu0 0
      %949 = vmatpush1.bf16.xpose.msra.mxu0 0
      %950 = vmatprep.subr.bf16.mxu0 0
      %951 = vmatpush1.bf16.xpose.msra.mxu0 0
      %952 = vmatprep.subr.bf16.mxu0 0
      %953 = vmatpush1.bf16.xpose.msra.mxu0 0
      %954 = vmatprep.subr.bf16.mxu0 0
      %955 = vmatpush1.bf16.xpose.msra.mxu0 0
      %956 = vmatprep.subr.bf16.mxu0 0
      %957 = vmatpush1.bf16.xpose.msra.mxu0 0
      %958 = vmatprep.subr.bf16.mxu0 0
      %959 = vmatpush1.bf16.xpose.msra.mxu0 0
      %960 = vmatprep.subr.bf16.mxu0 0
      %961 = vmatpush1.bf16.xpose.msra.mxu0 0
      %962 = vmatprep.subr.bf16.mxu0 0
      %963 = vmatpush1.bf16.xpose.msra.mxu0 0
      %964 = vmatprep.subr.bf16.mxu0 0
      %965 = vmatpush1.bf16.xpose.msra.mxu0 0
      %966 = vmatprep.mubr.bf16.mxu0 0
      %967 = vmatmul.mubr.bf16.gmra.mrb[0].mxu0 %v929
      %v968 = vpop.f32.mrb[0].mxu0
      %v969 = vadd.f32 0.0, %v968
      %v970 = vpop.f32.mrb[0].mxu0
      %v971 = vpop.f32.mrb[0].mxu0
      %v972 = vadd.f32 0.0, %v971
      %v973 = vpop.f32.mrb[0].mxu0
      %974 = vdwg.mxu0
      %975 = vrot.lane.b32.xlu0 %v821, 104
      %v976 = vpop.permute.xlu0 %975
      %977 = vrot.lane.b32.xlu0 %v821, 72
      %v978 = vpop.permute.xlu0 %977
      %v980 = vsel %vm825, %v976, 0
      %v983 = vsel %vm825, %v978, 0
      %985 = vmatprep.subr.bf16.mxu0 0
      %986 = vmatpush1.bf16.xpose.msra.mxu0 %v983
      %987 = vmatprep.subr.bf16.mxu0 0
      %988 = vmatpush1.bf16.xpose.msra.mxu0 0
      %989 = vmatprep.subr.bf16.mxu0 0
      %990 = vmatpush1.bf16.xpose.msra.mxu0 0
      %991 = vmatprep.subr.bf16.mxu0 0
      %992 = vmatpush1.bf16.xpose.msra.mxu0 0
      %993 = vmatprep.subr.bf16.mxu0 0
      %994 = vmatpush1.bf16.xpose.msra.mxu0 0
      %995 = vmatprep.subr.bf16.mxu0 0
      %996 = vmatpush1.bf16.xpose.msra.mxu0 0
      %997 = vmatprep.subr.bf16.mxu0 0
      %998 = vmatpush1.bf16.xpose.msra.mxu0 0
      %999 = vmatprep.subr.bf16.mxu0 0
      %1000 = vmatpush1.bf16.xpose.msra.mxu0 0
      %1001 = vmatprep.subr.bf16.mxu0 0
      %1002 = vmatpush1.bf16.xpose.msra.mxu0 0
      %1003 = vmatprep.subr.bf16.mxu0 0
      %1004 = vmatpush1.bf16.xpose.msra.mxu0 0
      %1005 = vmatprep.subr.bf16.mxu0 0
      %1006 = vmatpush1.bf16.xpose.msra.mxu0 0
      %1007 = vmatprep.subr.bf16.mxu0 0
      %1008 = vmatpush1.bf16.xpose.msra.mxu0 0
      %1009 = vmatprep.subr.bf16.mxu0 0
      %1010 = vmatpush1.bf16.xpose.msra.mxu0 0
      %1011 = vmatprep.subr.bf16.mxu0 0
      %1012 = vmatpush1.bf16.xpose.msra.mxu0 0
      %1013 = vmatprep.subr.bf16.mxu0 0
      %1014 = vmatpush1.bf16.xpose.msra.mxu0 0
      %1015 = vmatprep.subr.bf16.mxu0 0
      %1016 = vmatpush1.bf16.xpose.msra.mxu0 0
      %1017 = vmatprep.mubr.bf16.mxu0 0
      %1018 = vmatmul.mubr.bf16.gmra.mrb[0].mxu0 %v980
      %v1019 = vpop.f32.mrb[0].mxu0
      %v1020 = vadd.f32 0.0, %v1019
      %v1021 = vpop.f32.mrb[0].mxu0
      %v1022 = vpop.f32.mrb[0].mxu0
      %v1023 = vadd.f32 0.0, %v1022
      %v1024 = vpop.f32.mrb[0].mxu0
      %1025 = vdwg.mxu0
      %v1026 = vld [vmem:[%s1] sm:$0xff]
      %v1027 = vld [vmem:[%s1 + $0x8] sm:$0xff]
      %v1028 = vld [vmem:[%s1 + $0x10] sm:$0xff]
      %v1029 = vld [vmem:[%s1 + $0x18] sm:$0xff]
      %v1030 = vld [vmem:[%s1 + $0x20] sm:$0xff]
      %v1031 = vld [vmem:[%s1 + $0x28] sm:$0xff]
      %v1032 = vld [vmem:[%s1 + $0x30] sm:$0xff]
      %v1033 = vld [vmem:[%s1 + $0x38] sm:$0xff]
      %v1034 = vadd.f32 %v867, %v1026
      %v1035 = vadd.f32 %v870, %v1027
      %v1036 = vadd.f32 %v918, %v1028
      %v1037 = vadd.f32 %v921, %v1029
      %v1038 = vadd.f32 %v969, %v1030
      %v1039 = vadd.f32 %v972, %v1031
      %v1040 = vadd.f32 %v1020, %v1032
      %v1041 = vadd.f32 %v1023, %v1033
      %vm1042 = vcmask 130048
      %v1043 = vsel %vm1042, %v1034, -inf
      %1044 = vmax.xlane.f32.xlu0 %v1043
      %v1045 = vpop.xlane.xlu0 %1044
      %v1046 = vsel %vm1042, %v1035, -inf
      %1047 = vmax.xlane.f32.xlu0 %v1046
      %v1048 = vpop.xlane.xlu0 %1047
      %v1049 = vsel %vm1042, %v1036, -inf
      %1050 = vmax.xlane.f32.xlu0 %v1049
      %v1051 = vpop.xlane.xlu0 %1050
      %v1052 = vsel %vm1042, %v1037, -inf
      %1053 = vmax.xlane.f32.xlu0 %v1052
      %v1054 = vpop.xlane.xlu0 %1053
      %v1055 = vsel %vm1042, %v1038, -inf
      %1056 = vmax.xlane.f32.xlu0 %v1055
      %v1057 = vpop.xlane.xlu0 %1056
      %v1058 = vsel %vm1042, %v1039, -inf
      %1059 = vmax.xlane.f32.xlu0 %v1058
      %v1060 = vpop.xlane.xlu0 %1059
      %v1061 = vsel %vm1042, %v1040, -inf
      %1062 = vmax.xlane.f32.xlu0 %v1061
      %v1063 = vpop.xlane.xlu0 %1062
      %v1064 = vsel %vm1042, %v1041, -inf
      %1065 = vmax.xlane.f32.xlu0 %v1064
      %v1066 = vpop.xlane.xlu0 %1065
      %v1067 = vsub.f32 %v1034, %v1045
      %v1068 = vsub.f32 %v1035, %v1048
      %v1069 = vsub.f32 %v1036, %v1051
      %v1070 = vsub.f32 %v1037, %v1054
      %v1071 = vsub.f32 %v1038, %v1057
      %v1072 = vsub.f32 %v1039, %v1060
      %v1073 = vsub.f32 %v1040, %v1063
      %v1074 = vsub.f32 %v1041, %v1066
      %v1075 = vmul.f32 %v1067, 1.442695
      %v1076 = vpow.pop %v1075
      %v1077 = vmul.f32 %v1068, 1.442695
      %v1078 = vpow.pop %v1077
      %v1079 = vmul.f32 %v1069, 1.442695
      %v1080 = vpow.pop %v1079
      %v1081 = vmul.f32 %v1070, 1.442695
      %v1082 = vpow.pop %v1081
      %v1083 = vmul.f32 %v1071, 1.442695
      %v1084 = vpow.pop %v1083
      %v1085 = vmul.f32 %v1072, 1.442695
      %v1086 = vpow.pop %v1085
      %v1087 = vmul.f32 %v1073, 1.442695
      %v1088 = vpow.pop %v1087
      %v1089 = vmul.f32 %v1074, 1.442695
      %v1090 = vpow.pop %v1089
      %v1091 = vsel %vm1042, %v1076, 0.0
      %1092 = vadd.xlane.f32.xlu0 %v1091
      %v1093 = vpop.xlane.xlu0 %1092
      %v1094 = vsel %vm1042, %v1078, 0.0
      %1095 = vadd.xlane.f32.xlu0 %v1094
      %v1096 = vpop.xlane.xlu0 %1095
      %v1097 = vsel %vm1042, %v1080, 0.0
      %1098 = vadd.xlane.f32.xlu0 %v1097
      %v1099 = vpop.xlane.xlu0 %1098
      %v1100 = vsel %vm1042, %v1082, 0.0
      %1101 = vadd.xlane.f32.xlu0 %v1100
      %v1102 = vpop.xlane.xlu0 %1101
      %v1103 = vsel %vm1042, %v1084, 0.0
      %1104 = vadd.xlane.f32.xlu0 %v1103
      %v1105 = vpop.xlane.xlu0 %1104
      %v1106 = vsel %vm1042, %v1086, 0.0
      %1107 = vadd.xlane.f32.xlu0 %v1106
      %v1108 = vpop.xlane.xlu0 %1107
      %v1109 = vsel %vm1042, %v1088, 0.0
      %1110 = vadd.xlane.f32.xlu0 %v1109
      %v1111 = vpop.xlane.xlu0 %1110
      %v1112 = vsel %vm1042, %v1090, 0.0
      %1113 = vadd.xlane.f32.xlu0 %v1112
      %v1114 = vpop.xlane.xlu0 %1113
      %v1115 = vrcp.pop %v1093
      %v1116 = vrcp.pop %v1096
      %v1117 = vrcp.pop %v1099
      %v1118 = vrcp.pop %v1102
      %v1119 = vrcp.pop %v1105
      %v1120 = vrcp.pop %v1108
      %v1121 = vrcp.pop %v1111
      %v1122 = vrcp.pop %v1114
      %v1123 = vmul.f32 %v1076, %v1115
      %v1124 = vmul.f32 %v1078, %v1116
      %v1125 = vmul.f32 %v1080, %v1117
      %v1126 = vmul.f32 %v1082, %v1118
      %v1127 = vmul.f32 %v1084, %v1119
      %v1128 = vmul.f32 %v1086, %v1120
      %v1129 = vmul.f32 %v1088, %v1121
      %v1130 = vmul.f32 %v1090, %v1122
      %v1131 = vpack.c.bf16 %v1124, %v1123
      %1132 = vrot.lane.b32.xlu0 %v821, 64
      %v1133 = vpop.permute.xlu0 %1132
      %v1136 = vsel %vm1042, %v1131, 0
      %1138 = vmatprep.subr.bf16.mxu0 0
      %1139 = vmatpush1.bf16.msra.mxu0 %v1133
      %1140 = vmatprep.subr.bf16.mxu0 0
      %1141 = vmatpush1.bf16.msra.mxu0 0
      %1142 = vmatprep.subr.bf16.mxu0 0
      %1143 = vmatpush1.bf16.msra.mxu0 0
      %1144 = vmatprep.subr.bf16.mxu0 0
      %1145 = vmatpush1.bf16.msra.mxu0 0
      %1146 = vmatprep.subr.bf16.mxu0 0
      %1147 = vmatpush1.bf16.msra.mxu0 0
      %1148 = vmatprep.subr.bf16.mxu0 0
      %1149 = vmatpush1.bf16.msra.mxu0 0
      %1150 = vmatprep.subr.bf16.mxu0 0
      %1151 = vmatpush1.bf16.msra.mxu0 0
      %1152 = vmatprep.subr.bf16.mxu0 0
      %1153 = vmatpush1.bf16.msra.mxu0 0
      %1154 = vmatprep.subr.bf16.mxu0 0
      %1155 = vmatpush1.bf16.msra.mxu0 0
      %1156 = vmatprep.subr.bf16.mxu0 0
      %1157 = vmatpush1.bf16.msra.mxu0 0
      %1158 = vmatprep.subr.bf16.mxu0 0
      %1159 = vmatpush1.bf16.msra.mxu0 0
      %1160 = vmatprep.subr.bf16.mxu0 0
      %1161 = vmatpush1.bf16.msra.mxu0 0
      %1162 = vmatprep.subr.bf16.mxu0 0
      %1163 = vmatpush1.bf16.msra.mxu0 0
      %1164 = vmatprep.subr.bf16.mxu0 0
      %1165 = vmatpush1.bf16.msra.mxu0 0
      %1166 = vmatprep.subr.bf16.mxu0 0
      %1167 = vmatpush1.bf16.msra.mxu0 0
      %1168 = vmatprep.subr.bf16.mxu0 0
      %1169 = vmatpush1.bf16.msra.mxu0 0
      %1170 = vmatprep.mubr.bf16.mxu0 0
      %1171 = vmatmul.mubr.bf16.gmra.mrb[0].mxu0 %v1136
      %v1172 = vpop.f32.mrb[0].mxu0
      %v1173 = vadd.f32 0.0, %v1172
      %v1174 = vpop.f32.mrb[0].mxu0
      %v1175 = vpop.f32.mrb[0].mxu0
      %v1176 = vadd.f32 0.0, %v1175
      %v1177 = vpop.f32.mrb[0].mxu0
      %1178 = vdwg.mxu0
      %v1179 = vpack.c.bf16 %v1126, %v1125
      %1180 = vrot.lane.b32.xlu0 %v821, 56
      %v1181 = vpop.permute.xlu0 %1180
      %v1184 = vsel %vm1042, %v1179, 0
      %1186 = vmatprep.subr.bf16.mxu0 0
      %1187 = vmatpush1.bf16.msra.mxu0 %v1181
      %1188 = vmatprep.subr.bf16.mxu0 0
      %1189 = vmatpush1.bf16.msra.mxu0 0
      %1190 = vmatprep.subr.bf16.mxu0 0
      %1191 = vmatpush1.bf16.msra.mxu0 0
      %1192 = vmatprep.subr.bf16.mxu0 0
      %1193 = vmatpush1.bf16.msra.mxu0 0
      %1194 = vmatprep.subr.bf16.mxu0 0
      %1195 = vmatpush1.bf16.msra.mxu0 0
      %1196 = vmatprep.subr.bf16.mxu0 0
      %1197 = vmatpush1.bf16.msra.mxu0 0
      %1198 = vmatprep.subr.bf16.mxu0 0
      %1199 = vmatpush1.bf16.msra.mxu0 0
      %1200 = vmatprep.subr.bf16.mxu0 0
      %1201 = vmatpush1.bf16.msra.mxu0 0
      %1202 = vmatprep.subr.bf16.mxu0 0
      %1203 = vmatpush1.bf16.msra.mxu0 0
      %1204 = vmatprep.subr.bf16.mxu0 0
      %1205 = vmatpush1.bf16.msra.mxu0 0
      %1206 = vmatprep.subr.bf16.mxu0 0
      %1207 = vmatpush1.bf16.msra.mxu0 0
      %1208 = vmatprep.subr.bf16.mxu0 0
      %1209 = vmatpush1.bf16.msra.mxu0 0
      %1210 = vmatprep.subr.bf16.mxu0 0
      %1211 = vmatpush1.bf16.msra.mxu0 0
      %1212 = vmatprep.subr.bf16.mxu0 0
      %1213 = vmatpush1.bf16.msra.mxu0 0
      %1214 = vmatprep.subr.bf16.mxu0 0
      %1215 = vmatpush1.bf16.msra.mxu0 0
      %1216 = vmatprep.subr.bf16.mxu0 0
      %1217 = vmatpush1.bf16.msra.mxu0 0
      %1218 = vmatprep.mubr.bf16.mxu0 0
      %1219 = vmatmul.mubr.bf16.gmra.mrb[0].mxu0 %v1184
      %v1220 = vpop.f32.mrb[0].mxu0
      %v1221 = vadd.f32 0.0, %v1220
      %v1222 = vpop.f32.mrb[0].mxu0
      %v1223 = vpop.f32.mrb[0].mxu0
      %v1224 = vadd.f32 0.0, %v1223
      %v1225 = vpop.f32.mrb[0].mxu0
      %1226 = vdwg.mxu0
      %v1227 = vpack.c.bf16 %v1128, %v1127
      %1228 = vrot.lane.b32.xlu0 %v821, 48
      %v1229 = vpop.permute.xlu0 %1228
      %v1232 = vsel %vm1042, %v1227, 0
      %1234 = vmatprep.subr.bf16.mxu0 0
      %1235 = vmatpush1.bf16.msra.mxu0 %v1229
      %1236 = vmatprep.subr.bf16.mxu0 0
      %1237 = vmatpush1.bf16.msra.mxu0 0
      %1238 = vmatprep.subr.bf16.mxu0 0
      %1239 = vmatpush1.bf16.msra.mxu0 0
      %1240 = vmatprep.subr.bf16.mxu0 0
      %1241 = vmatpush1.bf16.msra.mxu0 0
      %1242 = vmatprep.subr.bf16.mxu0 0
      %1243 = vmatpush1.bf16.msra.mxu0 0
      %1244 = vmatprep.subr.bf16.mxu0 0
      %1245 = vmatpush1.bf16.msra.mxu0 0
      %1246 = vmatprep.subr.bf16.mxu0 0
      %1247 = vmatpush1.bf16.msra.mxu0 0
      %1248 = vmatprep.subr.bf16.mxu0 0
      %1249 = vmatpush1.bf16.msra.mxu0 0
      %1250 = vmatprep.subr.bf16.mxu0 0
      %1251 = vmatpush1.bf16.msra.mxu0 0
      %1252 = vmatprep.subr.bf16.mxu0 0
      %1253 = vmatpush1.bf16.msra.mxu0 0
      %1254 = vmatprep.subr.bf16.mxu0 0
      %1255 = vmatpush1.bf16.msra.mxu0 0
      %1256 = vmatprep.subr.bf16.mxu0 0
      %1257 = vmatpush1.bf16.msra.mxu0 0
      %1258 = vmatprep.subr.bf16.mxu0 0
      %1259 = vmatpush1.bf16.msra.mxu0 0
      %1260 = vmatprep.subr.bf16.mxu0 0
      %1261 = vmatpush1.bf16.msra.mxu0 0
      %1262 = vmatprep.subr.bf16.mxu0 0
      %1263 = vmatpush1.bf16.msra.mxu0 0
      %1264 = vmatprep.subr.bf16.mxu0 0
      %1265 = vmatpush1.bf16.msra.mxu0 0
      %1266 = vmatprep.mubr.bf16.mxu0 0
      %1267 = vmatmul.mubr.bf16.gmra.mrb[0].mxu0 %v1232
      %v1268 = vpop.f32.mrb[0].mxu0
      %v1269 = vadd.f32 0.0, %v1268
      %v1270 = vpop.f32.mrb[0].mxu0
      %v1271 = vpop.f32.mrb[0].mxu0
      %v1272 = vadd.f32 0.0, %v1271
      %v1273 = vpop.f32.mrb[0].mxu0
      %1274 = vdwg.mxu0
      %v1275 = vpack.c.bf16 %v1130, %v1129
      %1276 = vrot.lane.b32.xlu0 %v821, 40
      %v1277 = vpop.permute.xlu0 %1276
      %v1280 = vsel %vm1042, %v1275, 0
      %1282 = vmatprep.subr.bf16.mxu0 0
      %1283 = vmatpush1.bf16.msra.mxu0 %v1277
      %1284 = vmatprep.subr.bf16.mxu0 0
      %1285 = vmatpush1.bf16.msra.mxu0 0
      %1286 = vmatprep.subr.bf16.mxu0 0
      %1287 = vmatpush1.bf16.msra.mxu0 0
      %1288 = vmatprep.subr.bf16.mxu0 0
      %1289 = vmatpush1.bf16.msra.mxu0 0
      %1290 = vmatprep.subr.bf16.mxu0 0
      %1291 = vmatpush1.bf16.msra.mxu0 0
      %1292 = vmatprep.subr.bf16.mxu0 0
      %1293 = vmatpush1.bf16.msra.mxu0 0
      %1294 = vmatprep.subr.bf16.mxu0 0
      %1295 = vmatpush1.bf16.msra.mxu0 0
      %1296 = vmatprep.subr.bf16.mxu0 0
      %1297 = vmatpush1.bf16.msra.mxu0 0
      %1298 = vmatprep.subr.bf16.mxu0 0
      %1299 = vmatpush1.bf16.msra.mxu0 0
      %1300 = vmatprep.subr.bf16.mxu0 0
      %1301 = vmatpush1.bf16.msra.mxu0 0
      %1302 = vmatprep.subr.bf16.mxu0 0
      %1303 = vmatpush1.bf16.msra.mxu0 0
      %1304 = vmatprep.subr.bf16.mxu0 0
      %1305 = vmatpush1.bf16.msra.mxu0 0
      %1306 = vmatprep.subr.bf16.mxu0 0
      %1307 = vmatpush1.bf16.msra.mxu0 0
      %1308 = vmatprep.subr.bf16.mxu0 0
      %1309 = vmatpush1.bf16.msra.mxu0 0
      %1310 = vmatprep.subr.bf16.mxu0 0
      %1311 = vmatpush1.bf16.msra.mxu0 0
      %1312 = vmatprep.subr.bf16.mxu0 0
      %1313 = vmatpush1.bf16.msra.mxu0 0
      %1314 = vmatprep.mubr.bf16.mxu0 0
      %1315 = vmatmul.mubr.bf16.gmra.mrb[0].mxu0 %v1280
      %v1316 = vpop.f32.mrb[0].mxu0
      %v1317 = vadd.f32 0.0, %v1316
      %v1318 = vpop.f32.mrb[0].mxu0
      %v1319 = vpop.f32.mrb[0].mxu0
      %v1320 = vadd.f32 0.0, %v1319
      %v1321 = vpop.f32.mrb[0].mxu0
      %1322 = vdwg.mxu0
      %1325 = vrot.lane.b32.xlu0 %v1221, 8
      %v1326 = vpop.permute.xlu0 %1325
      %1327 = vrot.lane.b32.xlu0 %v1224, 8
      %v1328 = vpop.permute.xlu0 %1327
      %1333 = vrot.lane.b32.xlu0 %v1269, 16
      %v1334 = vpop.permute.xlu0 %1333
      %1335 = vrot.lane.b32.xlu0 %v1272, 16
      %v1336 = vpop.permute.xlu0 %1335
      %1341 = vrot.lane.b32.xlu0 %v1317, 24
      %v1342 = vpop.permute.xlu0 %1341
      %1343 = vrot.lane.b32.xlu0 %v1320, 24
      %v1344 = vpop.permute.xlu0 %1343
      %v1347 = vsel %vm825, %v1173, %v1326
      %v1348 = vsel %vm825, %v1176, %v1328
      %v1349 = vsel %vm1042, %v1347, %v1334
      %v1350 = vsel %vm1042, %v1348, %v1336
      %vm1351 = vcmask 195584
      %v1352 = vsel %vm1351, %v1349, %v1342
      %v1353 = vsel %vm1351, %v1350, %v1344
      %v1354 = vpack.c.bf16 %v1353, %v1352
      %v1355 = vld [vmem:[%s653] sm:$0xf]
      %v1356 = vld [vmem:[%s653 + $0x4] sm:$0xf]
      %v1357 = vld [vmem:[%s653 + $0x8] sm:$0xf]
      %v1358 = vld [vmem:[%s653 + $0xc] sm:$0xf]
      %v1363 = vunpack.c.l.b16 %v1355
      %v1364 = vunpack.c.l.b16 %v1356
      %v1365 = vunpack.c.l.b16 %v1357
      %v1366 = vunpack.c.l.b16 %v1358
      %v1367 = vpack.c.b16 %v1364, %v1363
      %v1368 = vpack.c.b16 %v1366, %v1365
      %v1372 = vsel %vm693, %v1354, 0
      %1374 = vmatprep.subr.bf16.mxu0 0
      %1375 = vmatpush1.bf16.msra.mxu0 %v1367
      %1376 = vmatprep.subr.bf16.mxu0 0
      %1377 = vmatpush1.bf16.msra.mxu0 %v1368
      %1378 = vmatprep.subr.bf16.mxu0 0
      %1379 = vmatpush1.bf16.msra.mxu0 0
      %1380 = vmatprep.subr.bf16.mxu0 0
      %1381 = vmatpush1.bf16.msra.mxu0 0
      %1382 = vmatprep.subr.bf16.mxu0 0
      %1383 = vmatpush1.bf16.msra.mxu0 0
      %1384 = vmatprep.subr.bf16.mxu0 0
      %1385 = vmatpush1.bf16.msra.mxu0 0
      %1386 = vmatprep.subr.bf16.mxu0 0
      %1387 = vmatpush1.bf16.msra.mxu0 0
      %1388 = vmatprep.subr.bf16.mxu0 0
      %1389 = vmatpush1.bf16.msra.mxu0 0
      %1390 = vmatprep.subr.bf16.mxu0 0
      %1391 = vmatpush1.bf16.msra.mxu0 0
      %1392 = vmatprep.subr.bf16.mxu0 0
      %1393 = vmatpush1.bf16.msra.mxu0 0
      %1394 = vmatprep.subr.bf16.mxu0 0
      %1395 = vmatpush1.bf16.msra.mxu0 0
      %1396 = vmatprep.subr.bf16.mxu0 0
      %1397 = vmatpush1.bf16.msra.mxu0 0
      %1398 = vmatprep.subr.bf16.mxu0 0
      %1399 = vmatpush1.bf16.msra.mxu0 0
      %1400 = vmatprep.subr.bf16.mxu0 0
      %1401 = vmatpush1.bf16.msra.mxu0 0
      %1402 = vmatprep.subr.bf16.mxu0 0
      %1403 = vmatpush1.bf16.msra.mxu0 0
      %1404 = vmatprep.subr.bf16.mxu0 0
      %1405 = vmatpush1.bf16.msra.mxu0 0
      %1406 = vmatprep.mubr.bf16.mxu0 0
      %1407 = vmatmul.mubr.bf16.gmra.mrb[0].mxu0 %v1372
      %v1408 = vpop.f32.mrb[0].mxu0
      %v1409 = vadd.f32 0.0, %v1408
      %v1410 = vpop.f32.mrb[0].mxu0
      %v1411 = vpop.f32.mrb[0].mxu0
      %v1412 = vadd.f32 0.0, %v1411
      %v1413 = vpop.f32.mrb[0].mxu0
      %1414 = vdwg.mxu0
      %v1415 = vadd.f32 %v689, %v1409
      %v1416 = vadd.f32 %v690, %v1412
      %v1417 = vld [vmem:[%s656] sm:$0x1]
      %v1419 = vlaneseq
      %v1420 = vshrl.u32 %v1419, 7
      %v1421 = vsub.s32 0, %v1420
      %v1422 = vrot.slane %v1417, %v1421
      %v1424 = vadd.f32 %v1415, %v1422
      %v1425 = vadd.f32 %v1416, %v1422
      %v1426 = vld [vmem:[%s659] sm:$0x1]
      %v1427 = vld [vmem:[%s662] sm:$0x1]
      %v1428 = vsel %vm693, %v1424, 0.0
      %1429 = vadd.xlane.f32.xlu0 %v1428
      %v1430 = vpop.xlane.xlu0 %1429
      %v1431 = vsel %vm693, %v1425, 0.0
      %1432 = vadd.xlane.f32.xlu0 %v1431
      %v1433 = vpop.xlane.xlu0 %1432
      %v1434 = vmul.f32 %v1430, %v700
      %v1435 = vmul.f32 %v1433, %v700
      %v1436 = vsub.f32 %v1424, %v1434
      %v1437 = vsub.f32 %v1425, %v1435
      %v1438 = vmul.f32 %v1436, %v1436
      %v1439 = vmul.f32 %v1437, %v1437
      %v1440 = vsel %vm693, %v1438, 0.0
      %1441 = vadd.xlane.f32.xlu0 %v1440
      %v1442 = vpop.xlane.xlu0 %1441
      %v1443 = vsel %vm693, %v1439, 0.0
      %1444 = vadd.xlane.f32.xlu0 %v1443
      %v1445 = vpop.xlane.xlu0 %1444
      %v1446 = vmul.f32 %v1442, 0.032258064
      %v1447 = vmul.f32 %v1445, 0.032258064
      %v1449 = vlaneseq
      %v1450 = vshrl.u32 %v1449, 7
      %v1451 = vsub.s32 0, %v1450
      %v1452 = vrot.slane %v1426, %v1451
      %v1454 = vmul.f32 %v1452, %v1436
      %v1455 = vmul.f32 %v1452, %v1437
      %v1456 = vrsqrt.pop %v1446
      %v1457 = vmul.f32 %v1446, %v1456
      %vm1458 = vcmp.eq.f32.partialorder %v1446, inf
      %v1459 = vsel %vm1458, %v1446, %v1457
      %vm1460 = vcmp.eq.f32.partialorder %v1446, 0.0
      %v1461 = vand.u32 %v1446, 2147483648
      %v1462 = vsel %vm1460, %v1461, %v1459
      %v1463 = vrsqrt.pop %v1447
      %v1464 = vmul.f32 %v1447, %v1463
      %vm1465 = vcmp.eq.f32.partialorder %v1447, inf
      %v1466 = vsel %vm1465, %v1447, %v1464
      %vm1467 = vcmp.eq.f32.partialorder %v1447, 0.0
      %v1468 = vand.u32 %v1447, 2147483648
      %v1469 = vsel %vm1467, %v1468, %v1466
      %v1470 = vadd.f32 %v1462, 1e-06
      %v1471 = vadd.f32 %v1469, 1e-06
      %v1472 = vrcp.pop %v1470
      %v1473 = vmul.f32 1.0, %v1472
      %v1474 = vrcp.pop %v1471
      %v1475 = vmul.f32 1.0, %v1474
      %v1476 = vmul.f32 %v1454, %v1473
      %v1477 = vmul.f32 %v1455, %v1475
      %v1479 = vlaneseq
      %v1480 = vshrl.u32 %v1479, 7
      %v1481 = vsub.s32 0, %v1480
      %v1482 = vrot.slane %v1427, %v1481
      %v1484 = vadd.f32 %v1476, %v1482
      %v1485 = vadd.f32 %v1477, %v1482
      %v1486 = vpack.c.bf16 %v1485, %v1484
      %v1487 = vld [vmem:[%s667] sm:$0xf]
      %v1488 = vld [vmem:[%s667 + $0x4] sm:$0xf]
      %v1489 = vld [vmem:[%s667 + $0x8] sm:$0xf]
      %v1490 = vld [vmem:[%s667 + $0xc] sm:$0xf]
      %v1491 = vld [vmem:[%s670] sm:$0x1]
      %v1493 = vlaneseq
      %v1494 = vshrl.u32 %v1493, 7
      %v1495 = vsub.s32 0, %v1494
      %v1496 = vrot.slane %v1491, %v1495
      %v1502 = vunpack.c.l.b16 %v1487
      %v1503 = vunpack.c.l.b16 %v1488
      %v1504 = vunpack.c.l.b16 %v1489
      %v1505 = vunpack.c.l.b16 %v1490
      %v1506 = vpack.c.b16 %v1503, %v1502
      %v1507 = vpack.c.b16 %v1505, %v1504
      %v1511 = vsel %vm693, %v1486, 0
      %1513 = vmatprep.subr.bf16.mxu0 0
      %1514 = vmatpush1.bf16.msra.mxu0 %v1506
      %1515 = vmatprep.subr.bf16.mxu0 0
      %1516 = vmatpush1.bf16.msra.mxu0 %v1507
      %1517 = vmatprep.subr.bf16.mxu0 0
      %1518 = vmatpush1.bf16.msra.mxu0 0
      %1519 = vmatprep.subr.bf16.mxu0 0
      %1520 = vmatpush1.bf16.msra.mxu0 0
      %1521 = vmatprep.subr.bf16.mxu0 0
      %1522 = vmatpush1.bf16.msra.mxu0 0
      %1523 = vmatprep.subr.bf16.mxu0 0
      %1524 = vmatpush1.bf16.msra.mxu0 0
      %1525 = vmatprep.subr.bf16.mxu0 0
      %1526 = vmatpush1.bf16.msra.mxu0 0
      %1527 = vmatprep.subr.bf16.mxu0 0
      %1528 = vmatpush1.bf16.msra.mxu0 0
      %1529 = vmatprep.subr.bf16.mxu0 0
      %1530 = vmatpush1.bf16.msra.mxu0 0
      %1531 = vmatprep.subr.bf16.mxu0 0
      %1532 = vmatpush1.bf16.msra.mxu0 0
      %1533 = vmatprep.subr.bf16.mxu0 0
      %1534 = vmatpush1.bf16.msra.mxu0 0
      %1535 = vmatprep.subr.bf16.mxu0 0
      %1536 = vmatpush1.bf16.msra.mxu0 0
      %1537 = vmatprep.subr.bf16.mxu0 0
      %1538 = vmatpush1.bf16.msra.mxu0 0
      %1539 = vmatprep.subr.bf16.mxu0 0
      %1540 = vmatpush1.bf16.msra.mxu0 0
      %1541 = vmatprep.subr.bf16.mxu0 0
      %1542 = vmatpush1.bf16.msra.mxu0 0
      %1543 = vmatprep.subr.bf16.mxu0 0
      %1544 = vmatpush1.bf16.msra.mxu0 0
      %1545 = vmatprep.mubr.bf16.mxu0 0
      %1546 = vmatmul.mubr.bf16.gmra.mrb[0].mxu0 %v1511
      %v1547 = vpop.f32.mrb[0].mxu0
      %v1548 = vadd.f32 %v1496, %v1547
      %v1549 = vpop.f32.mrb[0].mxu0
      %v1550 = vpop.f32.mrb[0].mxu0
      %v1551 = vadd.f32 %v1496, %v1550
      %v1552 = vpop.f32.mrb[0].mxu0
      %1553 = vdwg.mxu0
      %v1554 = vmax.f32 %v1548, 0.0
      %v1555 = vmax.f32 %v1551, 0.0
      %v1556 = vpack.c.bf16 %v1555, %v1554
      %v1557 = vld [vmem:[%s675] sm:$0xf]
      %v1558 = vld [vmem:[%s675 + $0x4] sm:$0xf]
      %v1559 = vld [vmem:[%s675 + $0x8] sm:$0xf]
      %v1560 = vld [vmem:[%s675 + $0xc] sm:$0xf]
      %v1561 = vld [vmem:[%s675 + $0x10] sm:$0xf]
      %v1562 = vld [vmem:[%s675 + $0x14] sm:$0xf]
      %v1563 = vld [vmem:[%s675 + $0x18] sm:$0xf]
      %v1564 = vld [vmem:[%s675 + $0x1c] sm:$0xf]
      %v1573 = vunpack.c.l.b16 %v1557
      %v1574 = vunpack.c.l.b16 %v1558
      %v1575 = vunpack.c.l.b16 %v1559
      %v1576 = vunpack.c.l.b16 %v1560
      %v1577 = vunpack.c.l.b16 %v1561
      %v1578 = vunpack.c.l.b16 %v1562
      %v1579 = vunpack.c.l.b16 %v1563
      %v1580 = vunpack.c.l.b16 %v1564
      %v1581 = vpack.c.b16 %v1574, %v1573
      %v1582 = vpack.c.b16 %v1576, %v1575
      %v1583 = vpack.c.b16 %v1578, %v1577
      %v1584 = vpack.c.b16 %v1580, %v1579
      %vm1589 = vcmask 523264
      %v1591 = vsel %vm1589, %v1556, 0
      %1593 = vmatprep.subr.bf16.mxu0 0
      %1594 = vmatpush1.bf16.msra.mxu0 %v1581
      %1595 = vmatprep.subr.bf16.mxu0 0
      %1596 = vmatpush1.bf16.msra.mxu0 %v1582
      %1597 = vmatprep.subr.bf16.mxu0 0
      %1598 = vmatpush1.bf16.msra.mxu0 %v1583
      %1599 = vmatprep.subr.bf16.mxu0 0
      %1600 = vmatpush1.bf16.msra.mxu0 %v1584
      %1601 = vmatprep.subr.bf16.mxu0 0
      %1602 = vmatpush1.bf16.msra.mxu0 0
      %1603 = vmatprep.subr.bf16.mxu0 0
      %1604 = vmatpush1.bf16.msra.mxu0 0
      %1605 = vmatprep.subr.bf16.mxu0 0
      %1606 = vmatpush1.bf16.msra.mxu0 0
      %1607 = vmatprep.subr.bf16.mxu0 0
      %1608 = vmatpush1.bf16.msra.mxu0 0
      %1609 = vmatprep.subr.bf16.mxu0 0
      %1610 = vmatpush1.bf16.msra.mxu0 0
      %1611 = vmatprep.subr.bf16.mxu0 0
      %1612 = vmatpush1.bf16.msra.mxu0 0
      %1613 = vmatprep.subr.bf16.mxu0 0
      %1614 = vmatpush1.bf16.msra.mxu0 0
      %1615 = vmatprep.subr.bf16.mxu0 0
      %1616 = vmatpush1.bf16.msra.mxu0 0
      %1617 = vmatprep.subr.bf16.mxu0 0
      %1618 = vmatpush1.bf16.msra.mxu0 0
      %1619 = vmatprep.subr.bf16.mxu0 0
      %1620 = vmatpush1.bf16.msra.mxu0 0
      %1621 = vmatprep.subr.bf16.mxu0 0
      %1622 = vmatpush1.bf16.msra.mxu0 0
      %1623 = vmatprep.subr.bf16.mxu0 0
      %1624 = vmatpush1.bf16.msra.mxu0 0
      %1625 = vmatprep.mubr.bf16.mxu0 0
      %1626 = vmatmul.mubr.bf16.gmra.mrb[0].mxu0 %v1591
      %v1627 = vpop.f32.mrb[0].mxu0
      %v1628 = vadd.f32 0.0, %v1627
      %v1629 = vpop.f32.mrb[0].mxu0
      %v1630 = vpop.f32.mrb[0].mxu0
      %v1631 = vadd.f32 0.0, %v1630
      %v1632 = vpop.f32.mrb[0].mxu0
      %1633 = vdwg.mxu0
      %v1634 = vadd.f32 %v1424, %v1628
      %v1635 = vadd.f32 %v1425, %v1631
      %v1636 = vld [vmem:[%s678] sm:$0x1]
      %v1638 = vlaneseq
      %v1639 = vshrl.u32 %v1638, 7
      %v1640 = vsub.s32 0, %v1639
      %v1641 = vrot.slane %v1636, %v1640
      %v1643 = vadd.f32 %v1634, %v1641
      %v1644 = vadd.f32 %v1635, %v1641
      %1645 = vst.msk [vmem:[%s16] sm:$0xff] %vm693, %v1643
      %1646 = vst.msk [vmem:[%s16 + $0x8] sm:$0xff] %vm693, %v1644
      %p1647 = scmp.eq.s32.totalorder %s27, 1
      // Predicated region
      $region89: #{encoder_forward.1} parent=83 // pred_check
        %p1648 = pneg %p1647
      $region90: #{encoder_forward.1} parent=83 // pred_check_branch
        %1650 = sbr.rel (%p1648) target = $region92
      $region91: #{encoder_forward.1} parent=83 // pred_region
        %v1651 = vld [vmem:[%s16] sm:$0xff]
        %v1652 = vld [vmem:[%s16 + $0x8] sm:$0xff]
        %v1653 = vld [vmem:[%s14] sm:$0x1]
        %v1654 = vld [vmem:[%s15] sm:$0x1]
        %v1655 = vsel %vm693, %v1651, 0.0
        %1656 = vadd.xlane.f32.xlu0 %v1655
        %v1657 = vpop.xlane.xlu0 %1656
        %v1658 = vsel %vm693, %v1652, 0.0
        %1659 = vadd.xlane.f32.xlu0 %v1658
        %v1660 = vpop.xlane.xlu0 %1659
        %v1661 = vmul.f32 %v1657, %v700
        %v1662 = vmul.f32 %v1660, %v700
        %v1663 = vsub.f32 %v1651, %v1661
        %v1664 = vsub.f32 %v1652, %v1662
        %v1665 = vmul.f32 %v1663, %v1663
        %v1666 = vmul.f32 %v1664, %v1664
        %v1667 = vsel %vm693, %v1665, 0.0
        %1668 = vadd.xlane.f32.xlu0 %v1667
        %v1669 = vpop.xlane.xlu0 %1668
        %v1670 = vsel %vm693, %v1666, 0.0
        %1671 = vadd.xlane.f32.xlu0 %v1670
        %v1672 = vpop.xlane.xlu0 %1671
        %v1673 = vmul.f32 %v1669, 0.032258064
        %v1674 = vmul.f32 %v1672, 0.032258064
        %v1676 = vlaneseq
        %v1677 = vshrl.u32 %v1676, 7
        %v1678 = vsub.s32 0, %v1677
        %v1679 = vrot.slane %v1653, %v1678
        %v1681 = vmul.f32 %v1679, %v1663
        %v1682 = vmul.f32 %v1679, %v1664
        %v1683 = vrsqrt.pop %v1673
        %v1684 = vmul.f32 %v1673, %v1683
        %vm1685 = vcmp.eq.f32.partialorder %v1673, inf
        %v1686 = vsel %vm1685, %v1673, %v1684
        %vm1687 = vcmp.eq.f32.partialorder %v1673, 0.0
        %v1688 = vand.u32 %v1673, 2147483648
        %v1689 = vsel %vm1687, %v1688, %v1686
        %v1690 = vrsqrt.pop %v1674
        %v1691 = vmul.f32 %v1674, %v1690
        %vm1692 = vcmp.eq.f32.partialorder %v1674, inf
        %v1693 = vsel %vm1692, %v1674, %v1691
        %vm1694 = vcmp.eq.f32.partialorder %v1674, 0.0
        %v1695 = vand.u32 %v1674, 2147483648
        %v1696 = vsel %vm1694, %v1695, %v1693
        %v1697 = vadd.f32 %v1689, 1e-06
        %v1698 = vadd.f32 %v1696, 1e-06
        %v1699 = vrcp.pop %v1697
        %v1700 = vmul.f32 1.0, %v1699
        %v1701 = vrcp.pop %v1698
        %v1702 = vmul.f32 1.0, %v1701
        %v1703 = vmul.f32 %v1681, %v1700
        %v1704 = vmul.f32 %v1682, %v1702
        %v1706 = vlaneseq
        %v1707 = vshrl.u32 %v1706, 7
        %v1708 = vsub.s32 0, %v1707
        %v1709 = vrot.slane %v1654, %v1708
        %v1711 = vadd.f32 %v1703, %v1709
        %v1712 = vadd.f32 %v1704, %v1709
        %1713 = vst.msk [vmem:[%s16] sm:$0xff] %vm693, %v1711
        %1714 = vst.msk [vmem:[%s16 + $0x8] sm:$0xff] %vm693, %v1712
      $region92: #{encoder_forward.1} parent=83 // pred_fallthru
        _
      // Predicated region
      $region93: #{encoder_forward.1} parent=83 // pred_check
        %p1715 = pneg %p436
      $region94: #{encoder_forward.1} parent=83 // pred_check_branch
        %1717 = sbr.rel (%p1715) target = $region96
      $region95: #{encoder_forward.1} parent=83 // pred_region
        _
      $region96: #{encoder_forward.1} parent=83 // pred_fallthru
        _
      // Predicated region
      $region97: #{encoder_forward.1} parent=83 // pred_check
        %p1718 = pneg %p436
      $region98: #{encoder_forward.1} parent=83 // pred_check_branch
        %1720 = sbr.rel (%p1718) target = $region100
      $region99: #{encoder_forward.1} parent=83 // pred_region
        _
      $region100: #{encoder_forward.1} parent=83 // pred_fallthru
        _
    $region84: #{encoder_forward.1} parent=5 // pred_fallthru
      _
    %p1721 = scmp.le.s32.totalorder 2, %s22
    // Predicated region
    $region101: #{encoder_forward.1} parent=5 // pred_check
      %p1722 = pneg %p1721
    $region102: #{encoder_forward.1} parent=5 // pred_check_branch
      %1724 = sbr.rel (%p1722) target = $region104
    $region103: #{encoder_forward.1} parent=5 // pred_region
      %s1725 = ssub.s32 %s22, 2
    $region104: #{encoder_forward.1} parent=5 // pred_fallthru
      _
  $region6: #{encoder_forward.1} parent=0 // loop_footer
    %s26 = sadd.s32 1, %s22
  $region7: #{encoder_forward.1} parent=0 // loop_footer_branch
    %21 = sbr.rel target = $region3
  $region8: #{encoder_forward.1} parent=0 // loop_exit
    _

</llo_original>
